<compile_context>
chip_gen: v5e
topology: v5e:2x2
jax: 0.10.0
libtpu: 0.0.40
codegen_flags: <defaults>
</compile_context>

<pallas_src>
import functools
import math

import jax
import jax.numpy as jnp
import numpy as np
from jax.experimental import pallas as pl
from jax.experimental.pallas import tpu as pltpu


INV_SQRT2 = 1.0 / math.sqrt(2.0)


# ----------------------------------------------------------------------------
# Fused ResidualBlock kernel (one grid step == one batch element)
# ----------------------------------------------------------------------------
def _residual_block_kernel(dilation,
                           x_ref, cond_ref, ds_ref,
                           w_dp_ref, b_dp_ref,
                           w_cond_ref, b_cond_ref,
                           w_dil_ref, b_dil_ref,
                           w_res_ref, b_res_ref,
                           w_skip_ref, b_skip_ref,
                           res_out_ref, skip_out_ref,
                           ypad_ref):
    C, L = x_ref.shape                       # (residual_channels, time)

    # --- diffusion projection: Linear(512 -> C), broadcast over time --------
    ds = ds_ref[...].astype(jnp.bfloat16)                        # (512, 1)
    d = jnp.dot(w_dp_ref[...], ds,
                preferred_element_type=jnp.float32) + b_dp_ref[...]   # (C, 1)

    # --- y = x + diffusion_step ---------------------------------------------
    x = x_ref[...]                                               # (C, L) f32
    y = x + d                                                    # (C, L) f32

    # --- dilated conv, k=3, padding=dilation, built from a padded VMEM tile --
    # ypad holds zeros on a `dilation`-wide border; conv = 3 shifted GEMMs.
    ypad_ref[...] = jnp.zeros_like(ypad_ref)
    ypad_ref[:, pl.ds(dilation, L)] = y.astype(ypad_ref.dtype)

    z = jnp.dot(w_dil_ref[0], ypad_ref[:, pl.ds(0, L)],
                preferred_element_type=jnp.float32)
    z = z + jnp.dot(w_dil_ref[1], ypad_ref[:, pl.ds(dilation, L)],
                    preferred_element_type=jnp.float32)
    z = z + jnp.dot(w_dil_ref[2], ypad_ref[:, pl.ds(2 * dilation, L)],
                    preferred_element_type=jnp.float32)
    z = z + b_dil_ref[...]                                       # (2C, L)

    # --- conditioner projection (1x1 conv) added in-kernel -------------------
    z = z + jnp.dot(w_cond_ref[...], cond_ref[...].astype(jnp.bfloat16),
                    preferred_element_type=jnp.float32) + b_cond_ref[...]

    # --- gated nonlinearity ---------------------------------------------------
    gate = z[:C, :]
    filt = z[C:, :]
    g = jax.nn.sigmoid(gate) * jnp.tanh(filt)                    # (C, L) f32
    g16 = g.astype(jnp.bfloat16)

    # --- output 1x1 convs ------------------------------------------------------
    residual = jnp.dot(w_res_ref[...], g16,
                       preferred_element_type=jnp.float32) + b_res_ref[...]
    skip = jnp.dot(w_skip_ref[...], g16,
                   preferred_element_type=jnp.float32) + b_skip_ref[...]

    res_out_ref[...] = (x + residual) * INV_SQRT2
    skip_out_ref[...] = skip


def residual_block(params, x, conditioner, diffusion_step, *, dilation):
    """Fused Pallas forward of ResidualBlock.

    x:              (B, C, L)        residual stream
    conditioner:    (B, n_mels, L)   mel conditioner
    diffusion_step: (B, 512)         diffusion-step embedding
    returns ((x + residual)/sqrt(2), skip), both (B, C, L) float32.
    """
    B, C, L = x.shape
    n_mels = conditioner.shape[1]
    Dd = diffusion_step.shape[1]
    C2 = 2 * C

    f32 = jnp.float32
    bf16 = jnp.bfloat16

    # --- host-side layout prep (tiny; weights -> bf16, biases -> f32 columns) --
    w_dp = params["w_dp"].astype(bf16)                               # (C, 512)
    w_cond = params["w_cond"][:, :, 0].astype(bf16)                  # (2C, n_mels)
    w_dil = jnp.transpose(params["w_dil"], (2, 0, 1)).astype(bf16)   # (3, 2C, C)
    w_res = params["w_res"][:, :, 0].astype(bf16)                    # (C, C)
    w_skip = params["w_skip"][:, :, 0].astype(bf16)                  # (C, C)

    col = lambda b: b.reshape(-1, 1).astype(f32)
    b_dp, b_cond = col(params["b_dp"]), col(params["b_cond"])
    b_dil, b_res, b_skip = col(params["b_dil"]), col(params["b_res"]), col(params["b_skip"])

    ds = diffusion_step.astype(f32).reshape(B, Dd, 1)                # (B, 512, 1)

    # --- BlockSpecs -------------------------------------------------------------
    def full(shape):           # replicated weight/bias block
        return pl.BlockSpec(shape, lambda i, _n=len(shape): (0,) * _n)

    def per_batch(shape):      # (Squeezed batch, *shape) block
        return pl.BlockSpec((pl.Squeezed(),) + shape,
                            lambda i, _n=len(shape): (i,) + (0,) * _n)

    in_specs = [
        per_batch((C, L)),          # x
        per_batch((n_mels, L)),     # conditioner
        per_batch((Dd, 1)),         # diffusion_step
        full((C, Dd)), full((C, 1)),        # w_dp, b_dp
        full((C2, n_mels)), full((C2, 1)),  # w_cond, b_cond
        full((3, C2, C)), full((C2, 1)),    # w_dil, b_dil
        full((C, C)), full((C, 1)),         # w_res, b_res
        full((C, C)), full((C, 1)),         # w_skip, b_skip
    ]
    out_specs = (per_batch((C, L)), per_batch((C, L)))
    out_shape = (jax.ShapeDtypeStruct((B, C, L), f32),
                 jax.ShapeDtypeStruct((B, C, L), f32))

    kernel = functools.partial(_residual_block_kernel, dilation)

    return pl.pallas_call(
        kernel,
        grid=(B,),
        in_specs=in_specs,
        out_specs=out_specs,
        out_shape=out_shape,
        scratch_shapes=[pltpu.VMEM((C, L + 2 * dilation), bf16)],   # padded conv tile
        compiler_params=pltpu.CompilerParams(
            dimension_semantics=("parallel",)),
    )(x.astype(f32), conditioner.astype(f32), ds,
      w_dp, b_dp, w_cond, b_cond, w_dil, b_dil, w_res, b_res, w_skip, b_skip)


# ----------------------------------------------------------------------------
# Pure-JAX f32 reference (matches the PyTorch module semantics)
# ----------------------------------------------------------------------------
def _conv1d_ref(x, w, b, *, dilation=1, padding=0):
    out = jax.lax.conv_general_dilated(
        x, w, window_strides=(1,), padding=[(padding, padding)],
        rhs_dilation=(dilation,), dimension_numbers=("NCH", "OIH", "NCH"))
    return out + b[None, :, None]


def residual_block_ref(params, x, conditioner, diffusion_step, *, dilation):
    C = x.shape[1]
    d = diffusion_step @ params["w_dp"].T + params["b_dp"]           # (B, C)
    y = x + d[:, :, None]
    z = _conv1d_ref(y, params["w_dil"], params["b_dil"],
                    dilation=dilation, padding=dilation)
    z = z + _conv1d_ref(conditioner, params["w_cond"], params["b_cond"])
    gate, filt = z[:, :C], z[:, C:]
    g = jax.nn.sigmoid(gate) * jnp.tanh(filt)
    residual = _conv1d_ref(g, params["w_res"], params["b_res"])
    skip = _conv1d_ref(g, params["w_skip"], params["b_skip"])
    return (x + residual) / math.sqrt(2.0), skip


# ----------------------------------------------------------------------------
# Deterministic synthetic parameters matching the module's init
# ----------------------------------------------------------------------------
def init_params(key, n_mels, C, d_emb=512):
    ks = jax.random.split(key, 10)

    def kaiming(k, shape):
        fan_in = int(np.prod(shape[1:]))
        return jax.random.normal(k, shape, jnp.float32) * math.sqrt(2.0 / fan_in)

    def lin_w(k, dout, din):
        lim = 1.0 / math.sqrt(din)
        return jax.random.uniform(k, (dout, din), jnp.float32, -lim, lim)

    small = lambda k, n: jax.random.normal(k, (n,), jnp.float32) * 0.05
    p = {}
    p["w_dil"], p["b_dil"] = kaiming(ks[0], (2 * C, C, 3)), small(ks[1], 2 * C)
    p["w_dp"], p["b_dp"] = lin_w(ks[2], C, d_emb), small(ks[3], C)
    p["w_cond"], p["b_cond"] = kaiming(ks[4], (2 * C, n_mels, 1)), small(ks[5], 2 * C)
    p["w_res"], p["b_res"] = kaiming(ks[6], (C, C, 1)), small(ks[7], C)
    p["w_skip"], p["b_skip"] = kaiming(ks[8], (C, C, 1)), small(ks[9], C)
    return p


# ----------------------------------------------------------------------------
if __name__ == "__main__":
    B, C, n_mels, L, dilation = 2, 64, 16, 256, 2

    key = jax.random.PRNGKey(0)
    kp, kx, kc, kd = jax.random.split(key, 4)
    params = init_params(kp, n_mels, C)

    x = jax.random.normal(kx, (B, C, L), jnp.float32)
    conditioner = jax.random.normal(kc, (B, n_mels, L), jnp.float32)
    diffusion_step = jax.random.normal(kd, (B, 512), jnp.float32)

    fwd = jax.jit(functools.partial(residual_block, dilation=dilation))
    out_res, out_skip = jax.block_until_ready(fwd(params, x, conditioner, diffusion_step))

    assert out_res.shape == (B, C, L) and out_skip.shape == (B, C, L)
    assert bool(jnp.all(jnp.isfinite(out_res))) and bool(jnp.all(jnp.isfinite(out_skip)))

    # bf16 matmul operands with f32 accumulation vs. a pure-f32 reference.
    ref_res, ref_skip = residual_block_ref(params, x, conditioner, diffusion_step,
                                           dilation=dilation)
    assert bool(jnp.allclose(out_res, ref_res, atol=5e-2, rtol=5e-2)), \
        float(jnp.max(jnp.abs(out_res - ref_res)))
    assert bool(jnp.allclose(out_skip, ref_skip, atol=5e-2, rtol=5e-2)), \
        float(jnp.max(jnp.abs(out_skip - ref_skip)))

    print("KERNEL_OK")
</pallas_src>

<mosaic_0001>
module attributes {stable_mosaic.version = 11 : i64} {
  func.func @_residual_block_kernel(%arg0: i32, %arg1: memref<1x64x256xf32, #tpu.memory_space<vmem>>, %arg2: memref<1x16x256xf32, #tpu.memory_space<vmem>>, %arg3: memref<1x512x1xf32, #tpu.memory_space<vmem>>, %arg4: memref<64x512xbf16, #tpu.memory_space<vmem>>, %arg5: memref<64x1xf32, #tpu.memory_space<vmem>>, %arg6: memref<128x16xbf16, #tpu.memory_space<vmem>>, %arg7: memref<128x1xf32, #tpu.memory_space<vmem>>, %arg8: memref<3x128x64xbf16, #tpu.memory_space<vmem>>, %arg9: memref<128x1xf32, #tpu.memory_space<vmem>>, %arg10: memref<64x64xbf16, #tpu.memory_space<vmem>>, %arg11: memref<64x1xf32, #tpu.memory_space<vmem>>, %arg12: memref<64x64xbf16, #tpu.memory_space<vmem>>, %arg13: memref<64x1xf32, #tpu.memory_space<vmem>>, %arg14: memref<1x64x256xf32, #tpu.memory_space<vmem>>, %arg15: memref<1x64x256xf32, #tpu.memory_space<vmem>>, %arg16: memref<64x260xbf16, #tpu.memory_space<vmem>>) attributes {dimension_semantics = [#tpu.dimension_semantics<parallel>], iteration_bounds = array<i64: 2>, scalar_prefetch = 0 : i64, scratch_operands = 1 : i64, tpu.core_type = #tpu.core_type<tc>, window_params = [{transform_indices = @transform_0, window_bounds = array<i64: 1, 64, 256>}, {transform_indices = @transform_1, window_bounds = array<i64: 1, 16, 256>}, {transform_indices = @transform_2, window_bounds = array<i64: 1, 512, 1>}, {pipeline_mode = #tpu.pipeline_mode<synchronous>, transform_indices = @transform_3, window_bounds = array<i64: 64, 512>}, {pipeline_mode = #tpu.pipeline_mode<synchronous>, transform_indices = @transform_4, window_bounds = array<i64: 64, 1>}, {pipeline_mode = #tpu.pipeline_mode<synchronous>, transform_indices = @transform_5, window_bounds = array<i64: 128, 16>}, {pipeline_mode = #tpu.pipeline_mode<synchronous>, transform_indices = @transform_6, window_bounds = array<i64: 128, 1>}, {pipeline_mode = #tpu.pipeline_mode<synchronous>, transform_indices = @transform_7, window_bounds = array<i64: 3, 128, 64>}, {pipeline_mode = #tpu.pipeline_mode<synchronous>, transform_indices = @transform_8, window_bounds = array<i64: 128, 1>}, {pipeline_mode = #tpu.pipeline_mode<synchronous>, transform_indices = @transform_9, window_bounds = array<i64: 64, 64>}, {pipeline_mode = #tpu.pipeline_mode<synchronous>, transform_indices = @transform_10, window_bounds = array<i64: 64, 1>}, {pipeline_mode = #tpu.pipeline_mode<synchronous>, transform_indices = @transform_11, window_bounds = array<i64: 64, 64>}, {pipeline_mode = #tpu.pipeline_mode<synchronous>, transform_indices = @transform_12, window_bounds = array<i64: 64, 1>}, {transform_indices = @transform_13, window_bounds = array<i64: 1, 64, 256>}, {transform_indices = @transform_14, window_bounds = array<i64: 1, 64, 256>}]} {
    %c0 = arith.constant 0 : index
    %c0_0 = arith.constant 0 : index
    %c0_1 = arith.constant 0 : index
    %0 = vector.load %arg3[%c0, %c0_0, %c0_1] : memref<1x512x1xf32, #tpu.memory_space<vmem>>, vector<1x512x1xf32>
    %1 = vector.shape_cast %0 : vector<1x512x1xf32> to vector<512x1xf32>
    %2 = arith.truncf %1 : vector<512x1xf32> to vector<512x1xbf16>
    %c0_2 = arith.constant 0 : index
    %c0_3 = arith.constant 0 : index
    %3 = vector.load %arg4[%c0_2, %c0_3] : memref<64x512xbf16, #tpu.memory_space<vmem>>, vector<64x512xbf16>
    %cst = arith.constant dense<0.000000e+00> : vector<64x1xf32>
    %4 = tpu.matmul %3, %2, %cst {dimension_numbers = #tpu.dot_dimension_numbers<[1], [0], [0], [1], [0, 0, 1, 1], [], []>} : vector<64x512xbf16>, vector<512x1xbf16>, vector<64x1xf32> -> vector<64x1xf32>
    %c0_4 = arith.constant 0 : index
    %c0_5 = arith.constant 0 : index
    %5 = vector.load %arg5[%c0_4, %c0_5] : memref<64x1xf32, #tpu.memory_space<vmem>>, vector<64x1xf32>
    %6 = arith.addf %4, %5 : vector<64x1xf32>
    %c0_6 = arith.constant 0 : index
    %c0_7 = arith.constant 0 : index
    %c0_8 = arith.constant 0 : index
    %7 = vector.load %arg1[%c0_6, %c0_7, %c0_8] : memref<1x64x256xf32, #tpu.memory_space<vmem>>, vector<1x64x256xf32>
    %8 = vector.shape_cast %7 : vector<1x64x256xf32> to vector<64x256xf32>
    %9 = vector.broadcast %6 : vector<64x1xf32> to vector<64x256xf32>
    %10 = arith.addf %8, %9 : vector<64x256xf32>
    %cst_9 = arith.constant 0.000000e+00 : bf16
    %11 = vector.broadcast %cst_9 : bf16 to vector<64x260xbf16>
    %c0_10 = arith.constant 0 : index
    %c0_11 = arith.constant 0 : index
    %12 = vector.load %arg16[%c0_10, %c0_11] : memref<64x260xbf16, #tpu.memory_space<vmem>>, vector<64x260xbf16>
    tpu.vector_store %arg16[%c0_10, %c0_11], %11 {strides = array<i32>} : memref<64x260xbf16, #tpu.memory_space<vmem>>, vector<64x260xbf16>,
    %13 = arith.truncf %10 : vector<64x256xf32> to vector<64x256xbf16>
    %c0_12 = arith.constant 0 : index
    %c2 = arith.constant 2 : index
    %14 = vector.load %arg16[%c0_12, %c2] : memref<64x260xbf16, #tpu.memory_space<vmem>>, vector<64x256xbf16>
    tpu.vector_store %arg16[%c0_12, %c2], %13 {strides = array<i32>} : memref<64x260xbf16, #tpu.memory_space<vmem>>, vector<64x256xbf16>,
    %c0_13 = arith.constant 0 : index
    %c0_14 = arith.constant 0 : index
    %c0_15 = arith.constant 0 : index
    %15 = vector.load %arg8[%c0_13, %c0_14, %c0_15] : memref<3x128x64xbf16, #tpu.memory_space<vmem>>, vector<1x128x64xbf16>
    %16 = vector.shape_cast %15 : vector<1x128x64xbf16> to vector<128x64xbf16>
    %c0_16 = arith.constant 0 : index
    %c0_17 = arith.constant 0 : index
    %17 = vector.load %arg16[%c0_16, %c0_17] : memref<64x260xbf16, #tpu.memory_space<vmem>>, vector<64x256xbf16>
    %cst_18 = arith.constant dense<0.000000e+00> : vector<128x256xf32>
    %18 = tpu.matmul %16, %17, %cst_18 {dimension_numbers = #tpu.dot_dimension_numbers<[1], [0], [0], [1], [0, 0, 1, 1], [], []>} : vector<128x64xbf16>, vector<64x256xbf16>, vector<128x256xf32> -> vector<128x256xf32>
    %c1 = arith.constant 1 : index
    %c0_19 = arith.constant 0 : index
    %c0_20 = arith.constant 0 : index
    %19 = vector.load %arg8[%c1, %c0_19, %c0_20] : memref<3x128x64xbf16, #tpu.memory_space<vmem>>, vector<1x128x64xbf16>
    %20 = vector.shape_cast %19 : vector<1x128x64xbf16> to vector<128x64xbf16>
    %c0_21 = arith.constant 0 : index
    %c2_22 = arith.constant 2 : index
    %21 = vector.load %arg16[%c0_21, %c2_22] : memref<64x260xbf16, #tpu.memory_space<vmem>>, vector<64x256xbf16>
    %cst_23 = arith.constant dense<0.000000e+00> : vector<128x256xf32>
    %22 = tpu.matmul %20, %21, %cst_23 {dimension_numbers = #tpu.dot_dimension_numbers<[1], [0], [0], [1], [0, 0, 1, 1], [], []>} : vector<128x64xbf16>, vector<64x256xbf16>, vector<128x256xf32> -> vector<128x256xf32>
    %23 = arith.addf %18, %22 : vector<128x256xf32>
    %c2_24 = arith.constant 2 : index
    %c0_25 = arith.constant 0 : index
    %c0_26 = arith.constant 0 : index
    %24 = vector.load %arg8[%c2_24, %c0_25, %c0_26] : memref<3x128x64xbf16, #tpu.memory_space<vmem>>, vector<1x128x64xbf16>
    %25 = vector.shape_cast %24 : vector<1x128x64xbf16> to vector<128x64xbf16>
    %c0_27 = arith.constant 0 : index
    %c4 = arith.constant 4 : index
    %26 = vector.load %arg16[%c0_27, %c4] : memref<64x260xbf16, #tpu.memory_space<vmem>>, vector<64x256xbf16>
    %cst_28 = arith.constant dense<0.000000e+00> : vector<128x256xf32>
    %27 = tpu.matmul %25, %26, %cst_28 {dimension_numbers = #tpu.dot_dimension_numbers<[1], [0], [0], [1], [0, 0, 1, 1], [], []>} : vector<128x64xbf16>, vector<64x256xbf16>, vector<128x256xf32> -> vector<128x256xf32>
    %28 = arith.addf %23, %27 : vector<128x256xf32>
    %c0_29 = arith.constant 0 : index
    %c0_30 = arith.constant 0 : index
    %29 = vector.load %arg9[%c0_29, %c0_30] : memref<128x1xf32, #tpu.memory_space<vmem>>, vector<128x1xf32>
    %30 = vector.broadcast %29 : vector<128x1xf32> to vector<128x256xf32>
    %31 = arith.addf %28, %30 : vector<128x256xf32>
    %c0_31 = arith.constant 0 : index
    %c0_32 = arith.constant 0 : index
    %32 = vector.load %arg6[%c0_31, %c0_32] : memref<128x16xbf16, #tpu.memory_space<vmem>>, vector<128x16xbf16>
    %c0_33 = arith.constant 0 : index
    %c0_34 = arith.constant 0 : index
    %c0_35 = arith.constant 0 : index
    %33 = vector.load %arg2[%c0_33, %c0_34, %c0_35] : memref<1x16x256xf32, #tpu.memory_space<vmem>>, vector<1x16x256xf32>
    %34 = vector.shape_cast %33 : vector<1x16x256xf32> to vector<16x256xf32>
    %35 = arith.truncf %34 : vector<16x256xf32> to vector<16x256xbf16>
    %cst_36 = arith.constant dense<0.000000e+00> : vector<128x256xf32>
    %36 = tpu.matmul %32, %35, %cst_36 {dimension_numbers = #tpu.dot_dimension_numbers<[1], [0], [0], [1], [0, 0, 1, 1], [], []>} : vector<128x16xbf16>, vector<16x256xbf16>, vector<128x256xf32> -> vector<128x256xf32>
    %37 = arith.addf %31, %36 : vector<128x256xf32>
    %c0_37 = arith.constant 0 : index
    %c0_38 = arith.constant 0 : index
    %38 = vector.load %arg7[%c0_37, %c0_38] : memref<128x1xf32, #tpu.memory_space<vmem>>, vector<128x1xf32>
    %39 = vector.broadcast %38 : vector<128x1xf32> to vector<128x256xf32>
    %40 = arith.addf %37, %39 : vector<128x256xf32>
    %41 = vector.extract_strided_slice %40 {offsets = [0, 0], sizes = [64, 256], strides = [1, 1]} : vector<128x256xf32> to vector<64x256xf32>
    %42 = vector.extract_strided_slice %40 {offsets = [64, 0], sizes = [64, 256], strides = [1, 1]} : vector<128x256xf32> to vector<64x256xf32>
    %43 = arith.negf %41 : vector<64x256xf32>
    %44 = math.exp %43 : vector<64x256xf32>
    %cst_39 = arith.constant 1.000000e+00 : f32
    %45 = vector.broadcast %cst_39 : f32 to vector<64x256xf32>
    %46 = arith.addf %45, %44 : vector<64x256xf32>
    %47 = arith.divf %45, %46 : vector<64x256xf32>
    %48 = math.tanh %42 : vector<64x256xf32>
    %49 = arith.mulf %47, %48 : vector<64x256xf32>
    %50 = arith.truncf %49 : vector<64x256xf32> to vector<64x256xbf16>
    %c0_40 = arith.constant 0 : index
    %c0_41 = arith.constant 0 : index
    %51 = vector.load %arg10[%c0_40, %c0_41] : memref<64x64xbf16, #tpu.memory_space<vmem>>, vector<64x64xbf16>
    %cst_42 = arith.constant dense<0.000000e+00> : vector<64x256xf32>
    %52 = tpu.matmul %51, %50, %cst_42 {dimension_numbers = #tpu.dot_dimension_numbers<[1], [0], [0], [1], [0, 0, 1, 1], [], []>} : vector<64x64xbf16>, vector<64x256xbf16>, vector<64x256xf32> -> vector<64x256xf32>
    %c0_43 = arith.constant 0 : index
    %c0_44 = arith.constant 0 : index
    %53 = vector.load %arg11[%c0_43, %c0_44] : memref<64x1xf32, #tpu.memory_space<vmem>>, vector<64x1xf32>
    %54 = vector.broadcast %53 : vector<64x1xf32> to vector<64x256xf32>
    %55 = arith.addf %52, %54 : vector<64x256xf32>
    %c0_45 = arith.constant 0 : index
    %c0_46 = arith.constant 0 : index
    %56 = vector.load %arg12[%c0_45, %c0_46] : memref<64x64xbf16, #tpu.memory_space<vmem>>, vector<64x64xbf16>
    %cst_47 = arith.constant dense<0.000000e+00> : vector<64x256xf32>
    %57 = tpu.matmul %56, %50, %cst_47 {dimension_numbers = #tpu.dot_dimension_numbers<[1], [0], [0], [1], [0, 0, 1, 1], [], []>} : vector<64x64xbf16>, vector<64x256xbf16>, vector<64x256xf32> -> vector<64x256xf32>
    %c0_48 = arith.constant 0 : index
    %c0_49 = arith.constant 0 : index
    %58 = vector.load %arg13[%c0_48, %c0_49] : memref<64x1xf32, #tpu.memory_space<vmem>>, vector<64x1xf32>
    %59 = vector.broadcast %58 : vector<64x1xf32> to vector<64x256xf32>
    %60 = arith.addf %57, %59 : vector<64x256xf32>
    %61 = arith.addf %8, %55 : vector<64x256xf32>
    %cst_50 = arith.constant 0.707106769 : f32
    %62 = vector.broadcast %cst_50 : f32 to vector<64x256xf32>
    %63 = arith.mulf %61, %62 : vector<64x256xf32>
    %c0_51 = arith.constant 0 : index
    %c0_52 = arith.constant 0 : index
    %c0_53 = arith.constant 0 : index
    %64 = vector.load %arg14[%c0_51, %c0_52, %c0_53] : memref<1x64x256xf32, #tpu.memory_space<vmem>>, vector<1x64x256xf32>
    %65 = vector.shape_cast %64 : vector<1x64x256xf32> to vector<64x256xf32>
    %66 = vector.shape_cast %63 : vector<64x256xf32> to vector<1x64x256xf32>
    tpu.vector_store %arg14[%c0_51, %c0_52, %c0_53], %66 {strides = array<i32>} : memref<1x64x256xf32, #tpu.memory_space<vmem>>, vector<1x64x256xf32>,
    %c0_54 = arith.constant 0 : index
    %c0_55 = arith.constant 0 : index
    %c0_56 = arith.constant 0 : index
    %67 = vector.load %arg15[%c0_54, %c0_55, %c0_56] : memref<1x64x256xf32, #tpu.memory_space<vmem>>, vector<1x64x256xf32>
    %68 = vector.shape_cast %67 : vector<1x64x256xf32> to vector<64x256xf32>
    %69 = vector.shape_cast %60 : vector<64x256xf32> to vector<1x64x256xf32>
    tpu.vector_store %arg15[%c0_54, %c0_55, %c0_56], %69 {strides = array<i32>} : memref<1x64x256xf32, #tpu.memory_space<vmem>>, vector<1x64x256xf32>,
    return
  }
  func.func @transform_0(%arg0: i32) -> (i32, i32, i32) {
    %c0_i32 = arith.constant 0 : i32
    %c0_i32_0 = arith.constant 0 : i32
    %c0_i32_1 = arith.constant 0 : i32
    return %arg0, %c0_i32, %c0_i32_0 : i32, i32, i32
  }
  func.func @transform_1(%arg0: i32) -> (i32, i32, i32) {
    %c0_i32 = arith.constant 0 : i32
    %c0_i32_0 = arith.constant 0 : i32
    %c0_i32_1 = arith.constant 0 : i32
    return %arg0, %c0_i32, %c0_i32_0 : i32, i32, i32
  }
  func.func @transform_2(%arg0: i32) -> (i32, i32, i32) {
    %c0_i32 = arith.constant 0 : i32
    %c0_i32_0 = arith.constant 0 : i32
    %c0_i32_1 = arith.constant 0 : i32
    return %arg0, %c0_i32, %c0_i32_0 : i32, i32, i32
  }
  func.func @transform_3(%arg0: i32) -> (i32, i32) {
    %c0_i32 = arith.constant 0 : i32
    %c0_i32_0 = arith.constant 0 : i32
    %c0_i32_1 = arith.constant 0 : i32
    return %c0_i32, %c0_i32_0 : i32, i32
  }
  func.func @transform_4(%arg0: i32) -> (i32, i32) {
    %c0_i32 = arith.constant 0 : i32
    %c0_i32_0 = arith.constant 0 : i32
    %c0_i32_1 = arith.constant 0 : i32
    return %c0_i32, %c0_i32_0 : i32, i32
  }
  func.func @transform_5(%arg0: i32) -> (i32, i32) {
    %c0_i32 = arith.constant 0 : i32
    %c0_i32_0 = arith.constant 0 : i32
    %c0_i32_1 = arith.constant 0 : i32
    return %c0_i32, %c0_i32_0 : i32, i32
  }
  func.func @transform_6(%arg0: i32) -> (i32, i32) {
    %c0_i32 = arith.constant 0 : i32
    %c0_i32_0 = arith.constant 0 : i32
    %c0_i32_1 = arith.constant 0 : i32
    return %c0_i32, %c0_i32_0 : i32, i32
  }
  func.func @transform_7(%arg0: i32) -> (i32, i32, i32) {
    %c0_i32 = arith.constant 0 : i32
    %c0_i32_0 = arith.constant 0 : i32
    %c0_i32_1 = arith.constant 0 : i32
    %c0_i32_2 = arith.constant 0 : i32
    return %c0_i32, %c0_i32_0, %c0_i32_1 : i32, i32, i32
  }
  func.func @transform_8(%arg0: i32) -> (i32, i32) {
    %c0_i32 = arith.constant 0 : i32
    %c0_i32_0 = arith.constant 0 : i32
    %c0_i32_1 = arith.constant 0 : i32
    return %c0_i32, %c0_i32_0 : i32, i32
  }
  func.func @transform_9(%arg0: i32) -> (i32, i32) {
    %c0_i32 = arith.constant 0 : i32
    %c0_i32_0 = arith.constant 0 : i32
    %c0_i32_1 = arith.constant 0 : i32
    return %c0_i32, %c0_i32_0 : i32, i32
  }
  func.func @transform_10(%arg0: i32) -> (i32, i32) {
    %c0_i32 = arith.constant 0 : i32
    %c0_i32_0 = arith.constant 0 : i32
    %c0_i32_1 = arith.constant 0 : i32
    return %c0_i32, %c0_i32_0 : i32, i32
  }
  func.func @transform_11(%arg0: i32) -> (i32, i32) {
    %c0_i32 = arith.constant 0 : i32
    %c0_i32_0 = arith.constant 0 : i32
    %c0_i32_1 = arith.constant 0 : i32
    return %c0_i32, %c0_i32_0 : i32, i32
  }
  func.func @transform_12(%arg0: i32) -> (i32, i32) {
    %c0_i32 = arith.constant 0 : i32
    %c0_i32_0 = arith.constant 0 : i32
    %c0_i32_1 = arith.constant 0 : i32
    return %c0_i32, %c0_i32_0 : i32, i32
  }
  func.func @transform_13(%arg0: i32) -> (i32, i32, i32) {
    %c0_i32 = arith.constant 0 : i32
    %c0_i32_0 = arith.constant 0 : i32
    %c0_i32_1 = arith.constant 0 : i32
    return %arg0, %c0_i32, %c0_i32_0 : i32, i32, i32
  }
  func.func @transform_14(%arg0: i32) -> (i32, i32, i32) {
    %c0_i32 = arith.constant 0 : i32
    %c0_i32_0 = arith.constant 0 : i32
    %c0_i32_1 = arith.constant 0 : i32
    return %arg0, %c0_i32, %c0_i32_0 : i32, i32, i32
  }
}

</mosaic_0001>

<llo_original>
// kernel: residual_block.1
$region0: #{residual_block.1}
  #allocation0 [shape = 'u32[]', space=smem, size = 0x4, offset = 0x4, fixed_abs, tag = 'smem constant byte address 0x4 - core index']
  #allocation1 [shape = 'u32[72,128]{1,0:T(1,128)}', space=vmem, size = 0x9000, scoped, tag = 'internal scratch']
  #allocation2 [shape = 'bf16[64,260]{1,0:T(8,128)(2,1)}', space=vmem, size = 0xc000, scoped, tag = 'scratch operand']
  %s0 = inlined_call_operand.vmem [shape: f32[2,64,256], index: 0, kind: input, shape index: {}]
  %s1 = inlined_call_operand.vmem [shape: f32[2,16,256], index: 1, kind: input, shape index: {}]
  %s2 = inlined_call_operand.vmem [shape: f32[2,512,1], index: 2, kind: input, shape index: {}]
  %s3 = inlined_call_operand.vmem [shape: bf16[64,512], index: 3, kind: input, shape index: {}]
  %s4 = inlined_call_operand.vmem [shape: f32[64,1], index: 4, kind: input, shape index: {}]
  %s5 = inlined_call_operand.vmem [shape: bf16[128,16], index: 5, kind: input, shape index: {}]
  %s6 = inlined_call_operand.vmem [shape: f32[128,1], index: 6, kind: input, shape index: {}]
  %s7 = inlined_call_operand.vmem [shape: bf16[3,128,64], index: 7, kind: input, shape index: {}]
  %s8 = inlined_call_operand.vmem [shape: f32[128,1], index: 8, kind: input, shape index: {}]
  %s9 = inlined_call_operand.vmem [shape: bf16[64,64], index: 9, kind: input, shape index: {}]
  %s10 = inlined_call_operand.vmem [shape: f32[64,1], index: 10, kind: input, shape index: {}]
  %s11 = inlined_call_operand.vmem [shape: bf16[64,64], index: 11, kind: input, shape index: {}]
  %s12 = inlined_call_operand.vmem [shape: f32[64,1], index: 12, kind: input, shape index: {}]
  %s13 = inlined_call_operand.hbm [shape: f32[2,64,256], index: 13, kind: output, shape index: {0}]
  %s14 = inlined_call_operand.hbm [shape: f32[2,64,256], index: 14, kind: output, shape index: {1}]
  %15 = xla_tuple %s13, %s14
  %s16 = sld [smem:[#allocation0]]
  $region93: #{residual_block.1} parent=0
    _
  %s18 = ssub.s32 1, %s16
  %s19 = scalar_select 0, %s18, %s16
  $region1: #{residual_block.1} parent=0
    #allocation3 [shape = 'u8[131072]{0}', space=vmem, size = 0x20000, scoped, tag = 'output window, operand 0']
    #allocation4 [shape = 's32[2]{0}', space=sflag, size = 0x8, scoped, tag = 'scoped memory for residual_block.1']
    #allocation5 [shape = 'u8[131072]{0}', space=vmem, size = 0x20000, scoped, tag = 'output window, operand 1']
    #allocation6 [shape = 's32[2]{0}', space=sflag, size = 0x8, scoped, tag = 'scoped memory for residual_block.1']
    %20 = vsyncpa [#allocation4], 0
    %s21 = scalar_lea.sflag [#allocation4], 1
    %22 = vsyncpa %s21, 0
    %23 = vsyncpa [#allocation6], 0
    %s24 = scalar_lea.sflag [#allocation6], 1
    %25 = vsyncpa %s24, 0
    loop: start=0, step=1, limit=4
    $region2: #{residual_block.1} parent=1 // loop_pre_header
      _
    $region3: #{residual_block.1} parent=1 // loop_header
      %s27 = sphi 0, %s31
      %p28 = scmp.ge.s32.totalorder %s27, 4
      %s37 = sphi 0, %s39
      %s40 = sphi 0, %s37
      %s41 = sphi 0, %s40
      %s57 = sphi 0, %s41
      %s63 = sphi 0, %s65
      %s66 = sphi 0, %s63
      %s67 = sphi 0, %s66
      %s83 = sphi 0, %s67
      %s89 = sphi 0, %s91
      %s92 = sphi 0, %s89
      %s93 = sphi 0, %s92
      %s109 = sphi 0, %s93
      %s113 = sphi 0, %s113
      %s115 = sphi 0, %s113
      %s116 = sphi 0, %s115
      %s130 = sphi 0, %s116
      %s134 = sphi 0, %s134
      %s136 = sphi 0, %s134
      %s137 = sphi 0, %s136
      %s151 = sphi 0, %s137
      %s155 = sphi 0, %s155
      %s157 = sphi 0, %s155
      %s158 = sphi 0, %s157
      %s172 = sphi 0, %s158
      %s176 = sphi 0, %s176
      %s178 = sphi 0, %s176
      %s179 = sphi 0, %s178
      %s193 = sphi 0, %s179
      %s197 = sphi 0, %s197
      %s199 = sphi 0, %s197
      %s200 = sphi 0, %s199
      %s214 = sphi 0, %s200
      %s218 = sphi 0, %s218
      %s220 = sphi 0, %s218
      %s221 = sphi 0, %s220
      %s235 = sphi 0, %s221
      %s239 = sphi 0, %s239
      %s241 = sphi 0, %s239
      %s242 = sphi 0, %s241
      %s256 = sphi 0, %s242
      %s260 = sphi 0, %s260
      %s262 = sphi 0, %s260
      %s263 = sphi 0, %s262
      %s277 = sphi 0, %s263
      %s281 = sphi 0, %s281
      %s283 = sphi 0, %s281
      %s284 = sphi 0, %s283
      %s298 = sphi 0, %s284
      %s302 = sphi 0, %s302
      %s304 = sphi 0, %s302
      %s305 = sphi 0, %s304
      %s319 = sphi 0, %s305
      %s325 = sphi 0, %s327
      %s328 = sphi 0, %s325
      %s329 = sphi 0, %s328
      %s345 = sphi 0, %s329
      %s351 = sphi 0, %s353
      %s354 = sphi 0, %s351
      %s355 = sphi 0, %s354
      %s371 = sphi 0, %s355
    $region4: #{residual_block.1} parent=1 // loop_header_branch
      %30 = sbr.rel (%p28) target = $region8
    $region5: #{residual_block.1} parent=1 // loop_body
      %s32 = ssub.s32 %s27, 1
      %s33 = ssub.s32 %s27, 2
      %s34 = sadd.s32 %s27, 1
      %s35 = ssub.s32 %s27, %s34
      %p36 = scmp.eq.s32.totalorder %s35, 0
      %s38 = sadd.s32 %s37, 1
      %s39 = scalar_select %p36, %s37, %s38
      %p42 = pneg %p36
      %p43 = scmp.eq.s32.totalorder %s27, 1
      %p44 = por %p42, %p43
      %p45 = scmp.ne.s32.totalorder %s37, %s40
      %p46 = scmp.eq.s32.totalorder %s27, 0
      %p47 = por %p45, %p46
      %p48 = scmp.ne.s32.totalorder %s37, %s40
      %p49 = scmp.eq.s32.totalorder %s32, 1
      %p50 = por %p48, %p49
      %p51 = scmp.ne.s32.totalorder %s40, %s41
      %p52 = scmp.eq.s32.totalorder %s32, 0
      %p53 = por %p51, %p52
      %p54 = scmp.ne.s32.totalorder %s40, %s41
      %p55 = scmp.eq.s32.totalorder %s33, 1
      %p56 = por %p54, %p55
      %p58 = scmp.ne.s32.totalorder %s41, %s57
      %p59 = scmp.eq.s32.totalorder %s33, 0
      %p60 = por %p58, %p59
      %s61 = ssub.s32 %s27, %s34
      %p62 = scmp.eq.s32.totalorder %s61, 0
      %s64 = sadd.s32 %s63, 1
      %s65 = scalar_select %p62, %s63, %s64
      %p68 = pneg %p62
      %p69 = scmp.eq.s32.totalorder %s27, 1
      %p70 = por %p68, %p69
      %p71 = scmp.ne.s32.totalorder %s63, %s66
      %p72 = scmp.eq.s32.totalorder %s27, 0
      %p73 = por %p71, %p72
      %p74 = scmp.ne.s32.totalorder %s63, %s66
      %p75 = scmp.eq.s32.totalorder %s32, 1
      %p76 = por %p74, %p75
      %p77 = scmp.ne.s32.totalorder %s66, %s67
      %p78 = scmp.eq.s32.totalorder %s32, 0
      %p79 = por %p77, %p78
      %p80 = scmp.ne.s32.totalorder %s66, %s67
      %p81 = scmp.eq.s32.totalorder %s33, 1
      %p82 = por %p80, %p81
      %p84 = scmp.ne.s32.totalorder %s67, %s83
      %p85 = scmp.eq.s32.totalorder %s33, 0
      %p86 = por %p84, %p85
      %s87 = ssub.s32 %s27, %s34
      %p88 = scmp.eq.s32.totalorder %s87, 0
      %s90 = sadd.s32 %s89, 1
      %s91 = scalar_select %p88, %s89, %s90
      %p94 = pneg %p88
      %p95 = scmp.eq.s32.totalorder %s27, 1
      %p96 = por %p94, %p95
      %p97 = scmp.ne.s32.totalorder %s89, %s92
      %p98 = scmp.eq.s32.totalorder %s27, 0
      %p99 = por %p97, %p98
      %p100 = scmp.ne.s32.totalorder %s89, %s92
      %p101 = scmp.eq.s32.totalorder %s32, 1
      %p102 = por %p100, %p101
      %p103 = scmp.ne.s32.totalorder %s92, %s93
      %p104 = scmp.eq.s32.totalorder %s32, 0
      %p105 = por %p103, %p104
      %p106 = scmp.ne.s32.totalorder %s92, %s93
      %p107 = scmp.eq.s32.totalorder %s33, 1
      %p108 = por %p106, %p107
      %p110 = scmp.ne.s32.totalorder %s93, %s109
      %p111 = scmp.eq.s32.totalorder %s33, 0
      %p112 = por %p110, %p111
      %s114 = sadd.s32 %s113, 1
      %p117 = scmp.eq.s32.totalorder %s27, 1
      %p118 = scmp.ne.s32.totalorder %s113, %s115
      %p119 = scmp.eq.s32.totalorder %s27, 0
      %p120 = por %p118, %p119
      %p121 = scmp.ne.s32.totalorder %s113, %s115
      %p122 = scmp.eq.s32.totalorder %s32, 1
      %p123 = por %p121, %p122
      %p124 = scmp.ne.s32.totalorder %s115, %s116
      %p125 = scmp.eq.s32.totalorder %s32, 0
      %p126 = por %p124, %p125
      %p127 = scmp.ne.s32.totalorder %s115, %s116
      %p128 = scmp.eq.s32.totalorder %s33, 1
      %p129 = por %p127, %p128
      %p131 = scmp.ne.s32.totalorder %s116, %s130
      %p132 = scmp.eq.s32.totalorder %s33, 0
      %p133 = por %p131, %p132
      %s135 = sadd.s32 %s134, 1
      %p138 = scmp.eq.s32.totalorder %s27, 1
      %p139 = scmp.ne.s32.totalorder %s134, %s136
      %p140 = scmp.eq.s32.totalorder %s27, 0
      %p141 = por %p139, %p140
      %p142 = scmp.ne.s32.totalorder %s134, %s136
      %p143 = scmp.eq.s32.totalorder %s32, 1
      %p144 = por %p142, %p143
      %p145 = scmp.ne.s32.totalorder %s136, %s137
      %p146 = scmp.eq.s32.totalorder %s32, 0
      %p147 = por %p145, %p146
      %p148 = scmp.ne.s32.totalorder %s136, %s137
      %p149 = scmp.eq.s32.totalorder %s33, 1
      %p150 = por %p148, %p149
      %p152 = scmp.ne.s32.totalorder %s137, %s151
      %p153 = scmp.eq.s32.totalorder %s33, 0
      %p154 = por %p152, %p153
      %s156 = sadd.s32 %s155, 1
      %p159 = scmp.eq.s32.totalorder %s27, 1
      %p160 = scmp.ne.s32.totalorder %s155, %s157
      %p161 = scmp.eq.s32.totalorder %s27, 0
      %p162 = por %p160, %p161
      %p163 = scmp.ne.s32.totalorder %s155, %s157
      %p164 = scmp.eq.s32.totalorder %s32, 1
      %p165 = por %p163, %p164
      %p166 = scmp.ne.s32.totalorder %s157, %s158
      %p167 = scmp.eq.s32.totalorder %s32, 0
      %p168 = por %p166, %p167
      %p169 = scmp.ne.s32.totalorder %s157, %s158
      %p170 = scmp.eq.s32.totalorder %s33, 1
      %p171 = por %p169, %p170
      %p173 = scmp.ne.s32.totalorder %s158, %s172
      %p174 = scmp.eq.s32.totalorder %s33, 0
      %p175 = por %p173, %p174
      %s177 = sadd.s32 %s176, 1
      %p180 = scmp.eq.s32.totalorder %s27, 1
      %p181 = scmp.ne.s32.totalorder %s176, %s178
      %p182 = scmp.eq.s32.totalorder %s27, 0
      %p183 = por %p181, %p182
      %p184 = scmp.ne.s32.totalorder %s176, %s178
      %p185 = scmp.eq.s32.totalorder %s32, 1
      %p186 = por %p184, %p185
      %p187 = scmp.ne.s32.totalorder %s178, %s179
      %p188 = scmp.eq.s32.totalorder %s32, 0
      %p189 = por %p187, %p188
      %p190 = scmp.ne.s32.totalorder %s178, %s179
      %p191 = scmp.eq.s32.totalorder %s33, 1
      %p192 = por %p190, %p191
      %p194 = scmp.ne.s32.totalorder %s179, %s193
      %p195 = scmp.eq.s32.totalorder %s33, 0
      %p196 = por %p194, %p195
      %s198 = sadd.s32 %s197, 1
      %p201 = scmp.eq.s32.totalorder %s27, 1
      %p202 = scmp.ne.s32.totalorder %s197, %s199
      %p203 = scmp.eq.s32.totalorder %s27, 0
      %p204 = por %p202, %p203
      %p205 = scmp.ne.s32.totalorder %s197, %s199
      %p206 = scmp.eq.s32.totalorder %s32, 1
      %p207 = por %p205, %p206
      %p208 = scmp.ne.s32.totalorder %s199, %s200
      %p209 = scmp.eq.s32.totalorder %s32, 0
      %p210 = por %p208, %p209
      %p211 = scmp.ne.s32.totalorder %s199, %s200
      %p212 = scmp.eq.s32.totalorder %s33, 1
      %p213 = por %p211, %p212
      %p215 = scmp.ne.s32.totalorder %s200, %s214
      %p216 = scmp.eq.s32.totalorder %s33, 0
      %p217 = por %p215, %p216
      %s219 = sadd.s32 %s218, 1
      %p222 = scmp.eq.s32.totalorder %s27, 1
      %p223 = scmp.ne.s32.totalorder %s218, %s220
      %p224 = scmp.eq.s32.totalorder %s27, 0
      %p225 = por %p223, %p224
      %p226 = scmp.ne.s32.totalorder %s218, %s220
      %p227 = scmp.eq.s32.totalorder %s32, 1
      %p228 = por %p226, %p227
      %p229 = scmp.ne.s32.totalorder %s220, %s221
      %p230 = scmp.eq.s32.totalorder %s32, 0
      %p231 = por %p229, %p230
      %p232 = scmp.ne.s32.totalorder %s220, %s221
      %p233 = scmp.eq.s32.totalorder %s33, 1
      %p234 = por %p232, %p233
      %p236 = scmp.ne.s32.totalorder %s221, %s235
      %p237 = scmp.eq.s32.totalorder %s33, 0
      %p238 = por %p236, %p237
      %s240 = sadd.s32 %s239, 1
      %p243 = scmp.eq.s32.totalorder %s27, 1
      %p244 = scmp.ne.s32.totalorder %s239, %s241
      %p245 = scmp.eq.s32.totalorder %s27, 0
      %p246 = por %p244, %p245
      %p247 = scmp.ne.s32.totalorder %s239, %s241
      %p248 = scmp.eq.s32.totalorder %s32, 1
      %p249 = por %p247, %p248
      %p250 = scmp.ne.s32.totalorder %s241, %s242
      %p251 = scmp.eq.s32.totalorder %s32, 0
      %p252 = por %p250, %p251
      %p253 = scmp.ne.s32.totalorder %s241, %s242
      %p254 = scmp.eq.s32.totalorder %s33, 1
      %p255 = por %p253, %p254
      %p257 = scmp.ne.s32.totalorder %s242, %s256
      %p258 = scmp.eq.s32.totalorder %s33, 0
      %p259 = por %p257, %p258
      %s261 = sadd.s32 %s260, 1
      %p264 = scmp.eq.s32.totalorder %s27, 1
      %p265 = scmp.ne.s32.totalorder %s260, %s262
      %p266 = scmp.eq.s32.totalorder %s27, 0
      %p267 = por %p265, %p266
      %p268 = scmp.ne.s32.totalorder %s260, %s262
      %p269 = scmp.eq.s32.totalorder %s32, 1
      %p270 = por %p268, %p269
      %p271 = scmp.ne.s32.totalorder %s262, %s263
      %p272 = scmp.eq.s32.totalorder %s32, 0
      %p273 = por %p271, %p272
      %p274 = scmp.ne.s32.totalorder %s262, %s263
      %p275 = scmp.eq.s32.totalorder %s33, 1
      %p276 = por %p274, %p275
      %p278 = scmp.ne.s32.totalorder %s263, %s277
      %p279 = scmp.eq.s32.totalorder %s33, 0
      %p280 = por %p278, %p279
      %s282 = sadd.s32 %s281, 1
      %p285 = scmp.eq.s32.totalorder %s27, 1
      %p286 = scmp.ne.s32.totalorder %s281, %s283
      %p287 = scmp.eq.s32.totalorder %s27, 0
      %p288 = por %p286, %p287
      %p289 = scmp.ne.s32.totalorder %s281, %s283
      %p290 = scmp.eq.s32.totalorder %s32, 1
      %p291 = por %p289, %p290
      %p292 = scmp.ne.s32.totalorder %s283, %s284
      %p293 = scmp.eq.s32.totalorder %s32, 0
      %p294 = por %p292, %p293
      %p295 = scmp.ne.s32.totalorder %s283, %s284
      %p296 = scmp.eq.s32.totalorder %s33, 1
      %p297 = por %p295, %p296
      %p299 = scmp.ne.s32.totalorder %s284, %s298
      %p300 = scmp.eq.s32.totalorder %s33, 0
      %p301 = por %p299, %p300
      %s303 = sadd.s32 %s302, 1
      %p306 = scmp.eq.s32.totalorder %s27, 1
      %p307 = scmp.ne.s32.totalorder %s302, %s304
      %p308 = scmp.eq.s32.totalorder %s27, 0
      %p309 = por %p307, %p308
      %p310 = scmp.ne.s32.totalorder %s302, %s304
      %p311 = scmp.eq.s32.totalorder %s32, 1
      %p312 = por %p310, %p311
      %p313 = scmp.ne.s32.totalorder %s304, %s305
      %p314 = scmp.eq.s32.totalorder %s32, 0
      %p315 = por %p313, %p314
      %p316 = scmp.ne.s32.totalorder %s304, %s305
      %p317 = scmp.eq.s32.totalorder %s33, 1
      %p318 = por %p316, %p317
      %p320 = scmp.ne.s32.totalorder %s305, %s319
      %p321 = scmp.eq.s32.totalorder %s33, 0
      %p322 = por %p320, %p321
      %s323 = ssub.s32 %s27, %s34
      %p324 = scmp.eq.s32.totalorder %s323, 0
      %s326 = sadd.s32 %s325, 1
      %s327 = scalar_select %p324, %s325, %s326
      %p330 = pneg %p324
      %p331 = scmp.eq.s32.totalorder %s27, 1
      %p332 = por %p330, %p331
      %p333 = scmp.ne.s32.totalorder %s325, %s328
      %p334 = scmp.eq.s32.totalorder %s27, 0
      %p335 = por %p333, %p334
      %p336 = scmp.ne.s32.totalorder %s325, %s328
      %p337 = scmp.eq.s32.totalorder %s32, 1
      %p338 = por %p336, %p337
      %p339 = scmp.ne.s32.totalorder %s328, %s329
      %p340 = scmp.eq.s32.totalorder %s32, 0
      %p341 = por %p339, %p340
      %p342 = scmp.ne.s32.totalorder %s328, %s329
      %p343 = scmp.eq.s32.totalorder %s33, 1
      %p344 = por %p342, %p343
      %p346 = scmp.ne.s32.totalorder %s329, %s345
      %p347 = scmp.eq.s32.totalorder %s33, 0
      %p348 = por %p346, %p347
      %s349 = ssub.s32 %s27, %s34
      %p350 = scmp.eq.s32.totalorder %s349, 0
      %s352 = sadd.s32 %s351, 1
      %s353 = scalar_select %p350, %s351, %s352
      %p356 = pneg %p350
      %p357 = scmp.eq.s32.totalorder %s27, 1
      %p358 = por %p356, %p357
      %p359 = scmp.ne.s32.totalorder %s351, %s354
      %p360 = scmp.eq.s32.totalorder %s27, 0
      %p361 = por %p359, %p360
      %p362 = scmp.ne.s32.totalorder %s351, %s354
      %p363 = scmp.eq.s32.totalorder %s32, 1
      %p364 = por %p362, %p363
      %p365 = scmp.ne.s32.totalorder %s354, %s355
      %p366 = scmp.eq.s32.totalorder %s32, 0
      %p367 = por %p365, %p366
      %p368 = scmp.ne.s32.totalorder %s354, %s355
      %p369 = scmp.eq.s32.totalorder %s33, 1
      %p370 = por %p368, %p369
      %p372 = scmp.ne.s32.totalorder %s355, %s371
      %p373 = scmp.eq.s32.totalorder %s33, 0
      %p374 = por %p372, %p373
      %p375 = scmp.le.s32.totalorder 1, %s27
      %p376 = scmp.lt.s32.totalorder %s27, 3
      %p377 = pnand %p375, %p376
      %p378 = pneg %p377
      // Predicated region
      $region9: #{residual_block.1} parent=5 // pred_check
        _
      $region10: #{residual_block.1} parent=5 // pred_check_branch
        %380 = sbr.rel (%p377) target = $region12
      $region11: #{residual_block.1} parent=5 // pred_region
        %s381 = ssub.s32 %s27, 1
        // Predicated region
        $region13: #{residual_block.1} parent=11 // pred_check
          %p382 = pneg %p126
        $region14: #{residual_block.1} parent=11 // pred_check_branch
          %384 = sbr.rel (%p382) target = $region16
        $region15: #{residual_block.1} parent=11 // pred_region
          _
        $region16: #{residual_block.1} parent=11 // pred_fallthru
          _
        // Predicated region
        $region17: #{residual_block.1} parent=11 // pred_check
          %p385 = pneg %p147
        $region18: #{residual_block.1} parent=11 // pred_check_branch
          %387 = sbr.rel (%p385) target = $region20
        $region19: #{residual_block.1} parent=11 // pred_region
          _
        $region20: #{residual_block.1} parent=11 // pred_fallthru
          _
        // Predicated region
        $region21: #{residual_block.1} parent=11 // pred_check
          %p388 = pneg %p168
        $region22: #{residual_block.1} parent=11 // pred_check_branch
          %390 = sbr.rel (%p388) target = $region24
        $region23: #{residual_block.1} parent=11 // pred_region
          _
        $region24: #{residual_block.1} parent=11 // pred_fallthru
          _
        // Predicated region
        $region25: #{residual_block.1} parent=11 // pred_check
          %p391 = pneg %p189
        $region26: #{residual_block.1} parent=11 // pred_check_branch
          %393 = sbr.rel (%p391) target = $region28
        $region27: #{residual_block.1} parent=11 // pred_region
          _
        $region28: #{residual_block.1} parent=11 // pred_fallthru
          _
        // Predicated region
        $region29: #{residual_block.1} parent=11 // pred_check
          %p394 = pneg %p210
        $region30: #{residual_block.1} parent=11 // pred_check_branch
          %396 = sbr.rel (%p394) target = $region32
        $region31: #{residual_block.1} parent=11 // pred_region
          _
        $region32: #{residual_block.1} parent=11 // pred_fallthru
          _
        // Predicated region
        $region33: #{residual_block.1} parent=11 // pred_check
          %p397 = pneg %p231
        $region34: #{residual_block.1} parent=11 // pred_check_branch
          %399 = sbr.rel (%p397) target = $region36
        $region35: #{residual_block.1} parent=11 // pred_region
          _
        $region36: #{residual_block.1} parent=11 // pred_fallthru
          _
        // Predicated region
        $region37: #{residual_block.1} parent=11 // pred_check
          %p400 = pneg %p252
        $region38: #{residual_block.1} parent=11 // pred_check_branch
          %402 = sbr.rel (%p400) target = $region40
        $region39: #{residual_block.1} parent=11 // pred_region
          _
        $region40: #{residual_block.1} parent=11 // pred_fallthru
          _
        // Predicated region
        $region41: #{residual_block.1} parent=11 // pred_check
          %p403 = pneg %p273
        $region42: #{residual_block.1} parent=11 // pred_check_branch
          %405 = sbr.rel (%p403) target = $region44
        $region43: #{residual_block.1} parent=11 // pred_region
          _
        $region44: #{residual_block.1} parent=11 // pred_fallthru
          _
        // Predicated region
        $region45: #{residual_block.1} parent=11 // pred_check
          %p406 = pneg %p294
        $region46: #{residual_block.1} parent=11 // pred_check_branch
          %408 = sbr.rel (%p406) target = $region48
        $region47: #{residual_block.1} parent=11 // pred_region
          _
        $region48: #{residual_block.1} parent=11 // pred_fallthru
          _
        // Predicated region
        $region49: #{residual_block.1} parent=11 // pred_check
          %p409 = pneg %p315
        $region50: #{residual_block.1} parent=11 // pred_check_branch
          %411 = sbr.rel (%p409) target = $region52
        $region51: #{residual_block.1} parent=11 // pred_region
          _
        $region52: #{residual_block.1} parent=11 // pred_fallthru
          _
      $region12: #{residual_block.1} parent=5 // pred_fallthru
        _
      %p412 = scmp.lt.s32.totalorder %s27, 2
      // Predicated region
      $region53: #{residual_block.1} parent=5 // pred_check
        %p413 = pneg %p412
      $region54: #{residual_block.1} parent=5 // pred_check_branch
        %415 = sbr.rel (%p413) target = $region56
      $region55: #{residual_block.1} parent=5 // pred_region
        // Predicated region
        $region57: #{residual_block.1} parent=55 // pred_check
          %p416 = pneg %p47
        $region58: #{residual_block.1} parent=55 // pred_check_branch
          %418 = sbr.rel (%p416) target = $region60
        $region59: #{residual_block.1} parent=55 // pred_region
          %p419 = scmp.lt.s32.totalorder %s27, 1
          %s420 = scalar_select %p419, %s27, 1
          %s421 = smul.addr %s420, 16
          %s422 = smul.addr %s421, 8
          %s423 = scalar_lea.vmem %s0, %s422
        $region60: #{residual_block.1} parent=55 // pred_fallthru
          _
        // Predicated region
        $region61: #{residual_block.1} parent=55 // pred_check
          %p424 = pneg %p73
        $region62: #{residual_block.1} parent=55 // pred_check_branch
          %426 = sbr.rel (%p424) target = $region64
        $region63: #{residual_block.1} parent=55 // pred_region
          %p427 = scmp.lt.s32.totalorder %s27, 1
          %s428 = scalar_select %p427, %s27, 1
          %s429 = smul.addr %s428, 4
          %s430 = smul.addr %s429, 8
          %s431 = scalar_lea.vmem %s1, %s430
        $region64: #{residual_block.1} parent=55 // pred_fallthru
          _
        // Predicated region
        $region65: #{residual_block.1} parent=55 // pred_check
          %p432 = pneg %p99
        $region66: #{residual_block.1} parent=55 // pred_check_branch
          %434 = sbr.rel (%p432) target = $region68
        $region67: #{residual_block.1} parent=55 // pred_region
          %p435 = scmp.lt.s32.totalorder %s27, 1
          %s436 = scalar_select %p435, %s27, 1
          %s437 = smul.addr %s436, 64
          %s438 = smul.addr %s437, 8
          %s439 = scalar_lea.vmem %s2, %s438
        $region68: #{residual_block.1} parent=55 // pred_fallthru
          _
      $region56: #{residual_block.1} parent=5 // pred_fallthru
        _
      %p440 = scmp.le.s32.totalorder 1, %s27
      %p441 = scmp.lt.s32.totalorder %s27, 3
      %p442 = pnand %p440, %p441
      %p443 = pneg %p442
      // Predicated region
      $region69: #{residual_block.1} parent=5 // pred_check
        _
      $region70: #{residual_block.1} parent=5 // pred_check_branch
        %445 = sbr.rel (%p442) target = $region72
      $region71: #{residual_block.1} parent=5 // pred_region
        %s446 = ssub.s32 %s27, 1
        %p447 = scmp.lt.s32.totalorder %s32, 1
        %s448 = scalar_select %p447, %s32, 1
        %s449 = smul.addr %s448, 16
        %s450 = smul.addr %s449, 8
        %s451 = scalar_lea.vmem %s0, %s450
        %p452 = pneg %p53
        %p453 = pneg %p50
        %p454 = scmp.lt.s32.totalorder %s32, 1
        %s455 = scalar_select %p454, %s32, 1
        %s456 = smul.addr %s455, 4
        %s457 = smul.addr %s456, 8
        %s458 = scalar_lea.vmem %s1, %s457
        %p459 = pneg %p79
        %p460 = pneg %p76
        %p461 = scmp.lt.s32.totalorder %s32, 1
        %s462 = scalar_select %p461, %s32, 1
        %s463 = smul.addr %s462, 64
        %s464 = smul.addr %s463, 8
        %s465 = scalar_lea.vmem %s2, %s464
        %p466 = pneg %p105
        %p467 = pneg %p102
        %p468 = pneg %p126
        %p469 = pneg %p123
        %p470 = pneg %p147
        %p471 = pneg %p144
        %p472 = pneg %p168
        %p473 = pneg %p165
        %p474 = pneg %p189
        %p475 = pneg %p186
        %p476 = pneg %p210
        %p477 = pneg %p207
        %p478 = pneg %p231
        %p479 = pneg %p228
        %p480 = pneg %p252
        %p481 = pneg %p249
        %p482 = pneg %p273
        %p483 = pneg %p270
        %p484 = pneg %p294
        %p485 = pneg %p291
        %p486 = pneg %p315
        %p487 = pneg %p312
        %p488 = pneg %p341
        %p489 = pneg %p338
        %s490 = sand.u32 %s328, 1
        %s491 = scalar_lea.sflag [#allocation4], %s490
        %s492 = sand.u32 %s328, 1
        %s493 = smul.addr %s492, 128
        %s494 = scalar_lea.vmem [#allocation3], %s493
        %p495 = pneg %p367
        %p496 = pneg %p364
        %s497 = sand.u32 %s354, 1
        %s498 = scalar_lea.sflag [#allocation6], %s497
        %s499 = sand.u32 %s354, 1
        %s500 = smul.addr %s499, 128
        %s501 = scalar_lea.vmem [#allocation5], %s500
        %p502 = scmp.lt.s32.totalorder %s32, 1
        %s503 = scalar_select %p502, %s32, 1
        %s504 = smul.addr %s503, 16
        %s505 = smul.addr %s504, 8
        %s506 = scalar_lea.vmem %s0, %s505
        %p507 = scmp.lt.s32.totalorder %s32, 1
        %s508 = scalar_select %p507, %s32, 1
        %s509 = smul.addr %s508, 4
        %s510 = smul.addr %s509, 8
        %s511 = scalar_lea.vmem %s1, %s510
        %p512 = scmp.lt.s32.totalorder %s32, 1
        %s513 = scalar_select %p512, %s32, 1
        %s514 = smul.addr %s513, 64
        %s515 = smul.addr %s514, 8
        %s516 = scalar_lea.vmem %s2, %s515
        %v518 = vld [vmem:[%s516] sm:$0xff]
        %v519 = vld [vmem:[%s516 + $0x8] sm:$0xff]
        %v520 = vld [vmem:[%s516 + $0x10] sm:$0xff]
        %v521 = vld [vmem:[%s516 + $0x18] sm:$0xff]
        %v522 = vld [vmem:[%s516 + $0x20] sm:$0xff]
        %v523 = vld [vmem:[%s516 + $0x28] sm:$0xff]
        %v524 = vld [vmem:[%s516 + $0x30] sm:$0xff]
        %v525 = vld [vmem:[%s516 + $0x38] sm:$0xff]
        %v526 = vld [vmem:[%s516 + $0x40] sm:$0xff]
        %v527 = vld [vmem:[%s516 + $0x48] sm:$0xff]
        %v528 = vld [vmem:[%s516 + $0x50] sm:$0xff]
        %v529 = vld [vmem:[%s516 + $0x58] sm:$0xff]
        %v530 = vld [vmem:[%s516 + $0x60] sm:$0xff]
        %v531 = vld [vmem:[%s516 + $0x68] sm:$0xff]
        %v532 = vld [vmem:[%s516 + $0x70] sm:$0xff]
        %v533 = vld [vmem:[%s516 + $0x78] sm:$0xff]
        %v534 = vld [vmem:[%s516 + $0x80] sm:$0xff]
        %v535 = vld [vmem:[%s516 + $0x88] sm:$0xff]
        %v536 = vld [vmem:[%s516 + $0x90] sm:$0xff]
        %v537 = vld [vmem:[%s516 + $0x98] sm:$0xff]
        %v538 = vld [vmem:[%s516 + $0xa0] sm:$0xff]
        %v539 = vld [vmem:[%s516 + $0xa8] sm:$0xff]
        %v540 = vld [vmem:[%s516 + $0xb0] sm:$0xff]
        %v541 = vld [vmem:[%s516 + $0xb8] sm:$0xff]
        %v542 = vld [vmem:[%s516 + $0xc0] sm:$0xff]
        %v543 = vld [vmem:[%s516 + $0xc8] sm:$0xff]
        %v544 = vld [vmem:[%s516 + $0xd0] sm:$0xff]
        %v545 = vld [vmem:[%s516 + $0xd8] sm:$0xff]
        %v546 = vld [vmem:[%s516 + $0xe0] sm:$0xff]
        %v547 = vld [vmem:[%s516 + $0xe8] sm:$0xff]
        %v548 = vld [vmem:[%s516 + $0xf0] sm:$0xff]
        %v549 = vld [vmem:[%s516 + $0xf8] sm:$0xff]
        %v550 = vld [vmem:[%s516 + $0x100] sm:$0xff]
        %v551 = vld [vmem:[%s516 + $0x108] sm:$0xff]
        %v552 = vld [vmem:[%s516 + $0x110] sm:$0xff]
        %v553 = vld [vmem:[%s516 + $0x118] sm:$0xff]
        %v554 = vld [vmem:[%s516 + $0x120] sm:$0xff]
        %v555 = vld [vmem:[%s516 + $0x128] sm:$0xff]
        %v556 = vld [vmem:[%s516 + $0x130] sm:$0xff]
        %v557 = vld [vmem:[%s516 + $0x138] sm:$0xff]
        %v558 = vld [vmem:[%s516 + $0x140] sm:$0xff]
        %v559 = vld [vmem:[%s516 + $0x148] sm:$0xff]
        %v560 = vld [vmem:[%s516 + $0x150] sm:$0xff]
        %v561 = vld [vmem:[%s516 + $0x158] sm:$0xff]
        %v562 = vld [vmem:[%s516 + $0x160] sm:$0xff]
        %v563 = vld [vmem:[%s516 + $0x168] sm:$0xff]
        %v564 = vld [vmem:[%s516 + $0x170] sm:$0xff]
        %v565 = vld [vmem:[%s516 + $0x178] sm:$0xff]
        %v566 = vld [vmem:[%s516 + $0x180] sm:$0xff]
        %v567 = vld [vmem:[%s516 + $0x188] sm:$0xff]
        %v568 = vld [vmem:[%s516 + $0x190] sm:$0xff]
        %v569 = vld [vmem:[%s516 + $0x198] sm:$0xff]
        %v570 = vld [vmem:[%s516 + $0x1a0] sm:$0xff]
        %v571 = vld [vmem:[%s516 + $0x1a8] sm:$0xff]
        %v572 = vld [vmem:[%s516 + $0x1b0] sm:$0xff]
        %v573 = vld [vmem:[%s516 + $0x1b8] sm:$0xff]
        %v574 = vld [vmem:[%s516 + $0x1c0] sm:$0xff]
        %v575 = vld [vmem:[%s516 + $0x1c8] sm:$0xff]
        %v576 = vld [vmem:[%s516 + $0x1d0] sm:$0xff]
        %v577 = vld [vmem:[%s516 + $0x1d8] sm:$0xff]
        %v578 = vld [vmem:[%s516 + $0x1e0] sm:$0xff]
        %v579 = vld [vmem:[%s516 + $0x1e8] sm:$0xff]
        %v580 = vld [vmem:[%s516 + $0x1f0] sm:$0xff]
        %v581 = vld [vmem:[%s516 + $0x1f8] sm:$0xff]
        %v582 = vpack.c.bf16 %v519, %v518
        %v583 = vpack.c.bf16 %v521, %v520
        %v584 = vpack.c.bf16 %v523, %v522
        %v585 = vpack.c.bf16 %v525, %v524
        %v586 = vpack.c.bf16 %v527, %v526
        %v587 = vpack.c.bf16 %v529, %v528
        %v588 = vpack.c.bf16 %v531, %v530
        %v589 = vpack.c.bf16 %v533, %v532
        %v590 = vpack.c.bf16 %v535, %v534
        %v591 = vpack.c.bf16 %v537, %v536
        %v592 = vpack.c.bf16 %v539, %v538
        %v593 = vpack.c.bf16 %v541, %v540
        %v594 = vpack.c.bf16 %v543, %v542
        %v595 = vpack.c.bf16 %v545, %v544
        %v596 = vpack.c.bf16 %v547, %v546
        %v597 = vpack.c.bf16 %v549, %v548
        %v598 = vpack.c.bf16 %v551, %v550
        %v599 = vpack.c.bf16 %v553, %v552
        %v600 = vpack.c.bf16 %v555, %v554
        %v601 = vpack.c.bf16 %v557, %v556
        %v602 = vpack.c.bf16 %v559, %v558
        %v603 = vpack.c.bf16 %v561, %v560
        %v604 = vpack.c.bf16 %v563, %v562
        %v605 = vpack.c.bf16 %v565, %v564
        %v606 = vpack.c.bf16 %v567, %v566
        %v607 = vpack.c.bf16 %v569, %v568
        %v608 = vpack.c.bf16 %v571, %v570
        %v609 = vpack.c.bf16 %v573, %v572
        %v610 = vpack.c.bf16 %v575, %v574
        %v611 = vpack.c.bf16 %v577, %v576
        %v612 = vpack.c.bf16 %v579, %v578
        %v613 = vpack.c.bf16 %v581, %v580
        %v614 = vld [vmem:[%s3] sm:$0xff]
        %v615 = vld [vmem:[%s3 + $0x8] sm:$0xff]
        %v616 = vld [vmem:[%s3 + $0x10] sm:$0xff]
        %v617 = vld [vmem:[%s3 + $0x18] sm:$0xff]
        %v618 = vld [vmem:[%s3 + $0x20] sm:$0xff]
        %v619 = vld [vmem:[%s3 + $0x28] sm:$0xff]
        %v620 = vld [vmem:[%s3 + $0x30] sm:$0xff]
        %v621 = vld [vmem:[%s3 + $0x38] sm:$0xff]
        %v622 = vld [vmem:[%s3 + $0x40] sm:$0xff]
        %v623 = vld [vmem:[%s3 + $0x48] sm:$0xff]
        %v624 = vld [vmem:[%s3 + $0x50] sm:$0xff]
        %v625 = vld [vmem:[%s3 + $0x58] sm:$0xff]
        %v626 = vld [vmem:[%s3 + $0x60] sm:$0xff]
        %v627 = vld [vmem:[%s3 + $0x68] sm:$0xff]
        %v628 = vld [vmem:[%s3 + $0x70] sm:$0xff]
        %v629 = vld [vmem:[%s3 + $0x78] sm:$0xff]
        %v630 = vld [vmem:[%s4] sm:$0xff]
        %v631 = vld [vmem:[%s4 + $0x8] sm:$0xff]
        %v632 = vld [vmem:[%s4 + $0x10] sm:$0xff]
        %v633 = vld [vmem:[%s4 + $0x18] sm:$0xff]
        %v634 = vld [vmem:[%s4 + $0x20] sm:$0xff]
        %v635 = vld [vmem:[%s4 + $0x28] sm:$0xff]
        %v636 = vld [vmem:[%s4 + $0x30] sm:$0xff]
        %v637 = vld [vmem:[%s4 + $0x38] sm:$0xff]
        %v654 = vunpack.c.l.b16 %v614
        %v655 = vunpack.c.h.b16 %v614
        %v656 = vunpack.c.l.b16 %v615
        %v657 = vunpack.c.h.b16 %v615
        %v658 = vunpack.c.l.b16 %v616
        %v659 = vunpack.c.h.b16 %v616
        %v660 = vunpack.c.l.b16 %v617
        %v661 = vunpack.c.h.b16 %v617
        %v662 = vunpack.c.l.b16 %v618
        %v663 = vunpack.c.h.b16 %v618
        %v664 = vunpack.c.l.b16 %v619
        %v665 = vunpack.c.h.b16 %v619
        %v666 = vunpack.c.l.b16 %v620
        %v667 = vunpack.c.h.b16 %v620
        %v668 = vunpack.c.l.b16 %v621
        %v669 = vunpack.c.h.b16 %v621
        %v670 = vunpack.c.l.b16 %v622
        %v671 = vunpack.c.h.b16 %v622
        %v672 = vunpack.c.l.b16 %v623
        %v673 = vunpack.c.h.b16 %v623
        %v674 = vunpack.c.l.b16 %v624
        %v675 = vunpack.c.h.b16 %v624
        %v676 = vunpack.c.l.b16 %v625
        %v677 = vunpack.c.h.b16 %v625
        %v678 = vunpack.c.l.b16 %v626
        %v679 = vunpack.c.h.b16 %v626
        %v680 = vunpack.c.l.b16 %v627
        %v681 = vunpack.c.h.b16 %v627
        %v682 = vunpack.c.l.b16 %v628
        %v683 = vunpack.c.h.b16 %v628
        %v684 = vunpack.c.l.b16 %v629
        %v685 = vunpack.c.h.b16 %v629
        %v686 = vpack.c.b16 %v658, %v654
        %v687 = vpack.c.b16 %v659, %v655
        %v688 = vpack.c.b16 %v660, %v656
        %v689 = vpack.c.b16 %v661, %v657
        %v690 = vpack.c.b16 %v666, %v662
        %v691 = vpack.c.b16 %v667, %v663
        %v692 = vpack.c.b16 %v668, %v664
        %v693 = vpack.c.b16 %v669, %v665
        %v694 = vpack.c.b16 %v674, %v670
        %v695 = vpack.c.b16 %v675, %v671
        %v696 = vpack.c.b16 %v676, %v672
        %v697 = vpack.c.b16 %v677, %v673
        %v698 = vpack.c.b16 %v682, %v678
        %v699 = vpack.c.b16 %v683, %v679
        %v700 = vpack.c.b16 %v684, %v680
        %v701 = vpack.c.b16 %v685, %v681
        %718 = vmatpush.bf16.msra.mxu0 %v589
        %719 = vmatpush.bf16.msra.mxu0 %v588
        %720 = vmatpush.bf16.msra.mxu0 %v587
        %721 = vmatpush.bf16.msra.mxu0 %v586
        %722 = vmatpush.bf16.msra.mxu0 %v585
        %723 = vmatpush.bf16.msra.mxu0 %v584
        %724 = vmatpush.bf16.msra.mxu0 %v583
        %725 = vmatpush.bf16.msra.mxu0 %v582
        %726 = vmatmul.bf16.gmra.mxu0 %v686
        %v727 = vpop.f32.mrf.mxu0
        %v728 = vadd.f32 %v630, %v727
        %v729 = vpop.f32.mrf.mxu0
        %v730 = vadd.f32 %v631, %v729
        %731 = vmatmul.bf16.gmra.mxu0 %v690
        %v732 = vpop.f32.mrf.mxu0
        %v733 = vadd.f32 %v632, %v732
        %v734 = vpop.f32.mrf.mxu0
        %v735 = vadd.f32 %v633, %v734
        %736 = vmatmul.bf16.gmra.mxu0 %v694
        %v737 = vpop.f32.mrf.mxu0
        %v738 = vadd.f32 %v634, %v737
        %v739 = vpop.f32.mrf.mxu0
        %v740 = vadd.f32 %v635, %v739
        %741 = vmatmul.bf16.gmra.mxu0 %v698
        %v742 = vpop.f32.mrf.mxu0
        %v743 = vadd.f32 %v636, %v742
        %v744 = vpop.f32.mrf.mxu0
        %v745 = vadd.f32 %v637, %v744
        %746 = vdwg.mxu0
        %747 = vmatpush.bf16.msra.mxu0 %v597
        %748 = vmatpush.bf16.msra.mxu0 %v596
        %749 = vmatpush.bf16.msra.mxu0 %v595
        %750 = vmatpush.bf16.msra.mxu0 %v594
        %751 = vmatpush.bf16.msra.mxu0 %v593
        %752 = vmatpush.bf16.msra.mxu0 %v592
        %753 = vmatpush.bf16.msra.mxu0 %v591
        %754 = vmatpush.bf16.msra.mxu0 %v590
        %755 = vmatmul.bf16.gmra.mxu0 %v687
        %v756 = vpop.f32.mrf.mxu0
        %v757 = vadd.f32 %v728, %v756
        %v758 = vpop.f32.mrf.mxu0
        %v759 = vadd.f32 %v730, %v758
        %760 = vmatmul.bf16.gmra.mxu0 %v691
        %v761 = vpop.f32.mrf.mxu0
        %v762 = vadd.f32 %v733, %v761
        %v763 = vpop.f32.mrf.mxu0
        %v764 = vadd.f32 %v735, %v763
        %765 = vmatmul.bf16.gmra.mxu0 %v695
        %v766 = vpop.f32.mrf.mxu0
        %v767 = vadd.f32 %v738, %v766
        %v768 = vpop.f32.mrf.mxu0
        %v769 = vadd.f32 %v740, %v768
        %770 = vmatmul.bf16.gmra.mxu0 %v699
        %v771 = vpop.f32.mrf.mxu0
        %v772 = vadd.f32 %v743, %v771
        %v773 = vpop.f32.mrf.mxu0
        %v774 = vadd.f32 %v745, %v773
        %775 = vdwg.mxu0
        %776 = vmatpush.bf16.msra.mxu0 %v605
        %777 = vmatpush.bf16.msra.mxu0 %v604
        %778 = vmatpush.bf16.msra.mxu0 %v603
        %779 = vmatpush.bf16.msra.mxu0 %v602
        %780 = vmatpush.bf16.msra.mxu0 %v601
        %781 = vmatpush.bf16.msra.mxu0 %v600
        %782 = vmatpush.bf16.msra.mxu0 %v599
        %783 = vmatpush.bf16.msra.mxu0 %v598
        %784 = vmatmul.bf16.gmra.mxu0 %v688
        %v785 = vpop.f32.mrf.mxu0
        %v786 = vadd.f32 %v757, %v785
        %v787 = vpop.f32.mrf.mxu0
        %v788 = vadd.f32 %v759, %v787
        %789 = vmatmul.bf16.gmra.mxu0 %v692
        %v790 = vpop.f32.mrf.mxu0
        %v791 = vadd.f32 %v762, %v790
        %v792 = vpop.f32.mrf.mxu0
        %v793 = vadd.f32 %v764, %v792
        %794 = vmatmul.bf16.gmra.mxu0 %v696
        %v795 = vpop.f32.mrf.mxu0
        %v796 = vadd.f32 %v767, %v795
        %v797 = vpop.f32.mrf.mxu0
        %v798 = vadd.f32 %v769, %v797
        %799 = vmatmul.bf16.gmra.mxu0 %v700
        %v800 = vpop.f32.mrf.mxu0
        %v801 = vadd.f32 %v772, %v800
        %v802 = vpop.f32.mrf.mxu0
        %v803 = vadd.f32 %v774, %v802
        %804 = vdwg.mxu0
        %805 = vmatpush.bf16.msra.mxu0 %v613
        %806 = vmatpush.bf16.msra.mxu0 %v612
        %807 = vmatpush.bf16.msra.mxu0 %v611
        %808 = vmatpush.bf16.msra.mxu0 %v610
        %809 = vmatpush.bf16.msra.mxu0 %v609
        %810 = vmatpush.bf16.msra.mxu0 %v608
        %811 = vmatpush.bf16.msra.mxu0 %v607
        %812 = vmatpush.bf16.msra.mxu0 %v606
        %813 = vmatmul.bf16.gmra.mxu0 %v689
        %v814 = vpop.f32.mrf.mxu0
        %v815 = vadd.f32 %v786, %v814
        %v816 = vpop.f32.mrf.mxu0
        %v817 = vadd.f32 %v788, %v816
        %818 = vmatmul.bf16.gmra.mxu0 %v693
        %v819 = vpop.f32.mrf.mxu0
        %v820 = vadd.f32 %v791, %v819
        %v821 = vpop.f32.mrf.mxu0
        %v822 = vadd.f32 %v793, %v821
        %823 = vmatmul.bf16.gmra.mxu0 %v697
        %v824 = vpop.f32.mrf.mxu0
        %v825 = vadd.f32 %v796, %v824
        %v826 = vpop.f32.mrf.mxu0
        %v827 = vadd.f32 %v798, %v826
        %828 = vmatmul.bf16.gmra.mxu0 %v701
        %v829 = vpop.f32.mrf.mxu0
        %v830 = vadd.f32 %v801, %v829
        %v831 = vpop.f32.mrf.mxu0
        %v832 = vadd.f32 %v803, %v831
        %833 = vdwg.mxu0
        %v834 = vld [vmem:[%s506] sm:$0xff]
        %v835 = vld [vmem:[%s506 + $0x8] sm:$0xff]
        %v836 = vld [vmem:[%s506 + $0x10] sm:$0xff]
        %v837 = vld [vmem:[%s506 + $0x18] sm:$0xff]
        %v838 = vld [vmem:[%s506 + $0x20] sm:$0xff]
        %v839 = vld [vmem:[%s506 + $0x28] sm:$0xff]
        %v840 = vld [vmem:[%s506 + $0x30] sm:$0xff]
        %v841 = vld [vmem:[%s506 + $0x38] sm:$0xff]
        %v842 = vld [vmem:[%s506 + $0x40] sm:$0xff]
        %v843 = vld [vmem:[%s506 + $0x48] sm:$0xff]
        %v844 = vld [vmem:[%s506 + $0x50] sm:$0xff]
        %v845 = vld [vmem:[%s506 + $0x58] sm:$0xff]
        %v846 = vld [vmem:[%s506 + $0x60] sm:$0xff]
        %v847 = vld [vmem:[%s506 + $0x68] sm:$0xff]
        %v848 = vld [vmem:[%s506 + $0x70] sm:$0xff]
        %v849 = vld [vmem:[%s506 + $0x78] sm:$0xff]
        %851 = vset.pattern.permute.xlu0 0
        %852 = vperm.xlu0 %851, %v815
        %v853 = vpop.permute.xlu0 %852
        %856 = vset.pattern.permute.xlu0 0
        %857 = vperm.xlu0 %856, %v817
        %v858 = vpop.permute.xlu0 %857
        %861 = vset.pattern.permute.xlu0 0
        %862 = vperm.xlu0 %861, %v820
        %v863 = vpop.permute.xlu0 %862
        %866 = vset.pattern.permute.xlu0 0
        %867 = vperm.xlu0 %866, %v822
        %v868 = vpop.permute.xlu0 %867
        %871 = vset.pattern.permute.xlu0 0
        %872 = vperm.xlu0 %871, %v825
        %v873 = vpop.permute.xlu0 %872
        %876 = vset.pattern.permute.xlu0 0
        %877 = vperm.xlu0 %876, %v827
        %v878 = vpop.permute.xlu0 %877
        %881 = vset.pattern.permute.xlu0 0
        %882 = vperm.xlu0 %881, %v830
        %v883 = vpop.permute.xlu0 %882
        %886 = vset.pattern.permute.xlu0 0
        %887 = vperm.xlu0 %886, %v832
        %v888 = vpop.permute.xlu0 %887
        %v890 = vadd.f32 %v834, %v853
        %v891 = vadd.f32 %v835, %v853
        %v892 = vadd.f32 %v836, %v858
        %v893 = vadd.f32 %v837, %v858
        %v894 = vadd.f32 %v838, %v863
        %v895 = vadd.f32 %v839, %v863
        %v896 = vadd.f32 %v840, %v868
        %v897 = vadd.f32 %v841, %v868
        %v898 = vadd.f32 %v842, %v873
        %v899 = vadd.f32 %v843, %v873
        %v900 = vadd.f32 %v844, %v878
        %v901 = vadd.f32 %v845, %v878
        %v902 = vadd.f32 %v846, %v883
        %v903 = vadd.f32 %v847, %v883
        %v904 = vadd.f32 %v848, %v888
        %v905 = vadd.f32 %v849, %v888
        %906 = vst [vmem:[#allocation2] sm:$0xff] 0
        %vm907 = vcmask 27648
        %908 = vst.msk [vmem:[#allocation2 + $0x8] sm:$0xf] %vm907, 0
        %909 = vst [vmem:[#allocation2 + $0xc] sm:$0xff] 0
        %910 = vst.msk [vmem:[#allocation2 + $0x14] sm:$0xf] %vm907, 0
        %911 = vst [vmem:[#allocation2 + $0x18] sm:$0xff] 0
        %912 = vst.msk [vmem:[#allocation2 + $0x20] sm:$0xf] %vm907, 0
        %913 = vst [vmem:[#allocation2 + $0x24] sm:$0xff] 0
        %914 = vst.msk [vmem:[#allocation2 + $0x2c] sm:$0xf] %vm907, 0
        %915 = vst [vmem:[#allocation2 + $0x30] sm:$0xff] 0
        %916 = vst.msk [vmem:[#allocation2 + $0x38] sm:$0xf] %vm907, 0
        %917 = vst [vmem:[#allocation2 + $0x3c] sm:$0xff] 0
        %918 = vst.msk [vmem:[#allocation2 + $0x44] sm:$0xf] %vm907, 0
        %919 = vst [vmem:[#allocation2 + $0x48] sm:$0xff] 0
        %920 = vst.msk [vmem:[#allocation2 + $0x50] sm:$0xf] %vm907, 0
        %921 = vst [vmem:[#allocation2 + $0x54] sm:$0xff] 0
        %922 = vst.msk [vmem:[#allocation2 + $0x5c] sm:$0xf] %vm907, 0
        %v923 = vpack.c.bf16 %v891, %v890
        %v924 = vpack.c.bf16 %v893, %v892
        %v925 = vpack.c.bf16 %v895, %v894
        %v926 = vpack.c.bf16 %v897, %v896
        %v927 = vpack.c.bf16 %v899, %v898
        %v928 = vpack.c.bf16 %v901, %v900
        %v929 = vpack.c.bf16 %v903, %v902
        %v930 = vpack.c.bf16 %v905, %v904
        %939 = vrot.lane.b32.xlu0 %v923, 2
        %v940 = vpop.permute.xlu0 %939
        %941 = vrot.lane.b32.xlu0 %v924, 2
        %v942 = vpop.permute.xlu0 %941
        %943 = vrot.lane.b32.xlu0 %v925, 2
        %v944 = vpop.permute.xlu0 %943
        %945 = vrot.lane.b32.xlu0 %v926, 2
        %v946 = vpop.permute.xlu0 %945
        %947 = vrot.lane.b32.xlu0 %v927, 2
        %v948 = vpop.permute.xlu0 %947
        %949 = vrot.lane.b32.xlu0 %v928, 2
        %v950 = vpop.permute.xlu0 %949
        %951 = vrot.lane.b32.xlu0 %v929, 2
        %v952 = vpop.permute.xlu0 %951
        %953 = vrot.lane.b32.xlu0 %v930, 2
        %v954 = vpop.permute.xlu0 %953
        %v955 = vrot.slane %v940, 4
        %v956 = vrot.slane %v942, 4
        %v957 = vrot.slane %v944, 4
        %v958 = vrot.slane %v946, 4
        %v959 = vrot.slane %v948, 4
        %v960 = vrot.slane %v950, 4
        %v961 = vrot.slane %v952, 4
        %v962 = vrot.slane %v954, 4
        %vm963 = vcmask 15360
        %v964 = vsel %vm963, %v955, %v940
        %v965 = vsel %vm963, %v956, %v942
        %v966 = vsel %vm963, %v957, %v944
        %v967 = vsel %vm963, %v958, %v946
        %v968 = vsel %vm963, %v959, %v948
        %v969 = vsel %vm963, %v960, %v950
        %v970 = vsel %vm963, %v961, %v952
        %v971 = vsel %vm963, %v962, %v954
        %vm988 = vcmask 1043472
        %vm989 = vcmask 1047556
        %vm990 = vmor %vm989, %vm988
        %991 = vst.msk [vmem:[#allocation2] sm:$0xff] %vm990, %v964
        %vm992 = vcmask 11264
        %993 = vst.msk [vmem:[#allocation2 + $0x8] sm:$0xf] %vm992, %v955
        %994 = vst.msk [vmem:[#allocation2 + $0xc] sm:$0xff] %vm990, %v965
        %995 = vst.msk [vmem:[#allocation2 + $0x14] sm:$0xf] %vm992, %v956
        %996 = vst.msk [vmem:[#allocation2 + $0x18] sm:$0xff] %vm990, %v966
        %997 = vst.msk [vmem:[#allocation2 + $0x20] sm:$0xf] %vm992, %v957
        %998 = vst.msk [vmem:[#allocation2 + $0x24] sm:$0xff] %vm990, %v967
        %999 = vst.msk [vmem:[#allocation2 + $0x2c] sm:$0xf] %vm992, %v958
        %1000 = vst.msk [vmem:[#allocation2 + $0x30] sm:$0xff] %vm990, %v968
        %1001 = vst.msk [vmem:[#allocation2 + $0x38] sm:$0xf] %vm992, %v959
        %1002 = vst.msk [vmem:[#allocation2 + $0x3c] sm:$0xff] %vm990, %v969
        %1003 = vst.msk [vmem:[#allocation2 + $0x44] sm:$0xf] %vm992, %v960
        %1004 = vst.msk [vmem:[#allocation2 + $0x48] sm:$0xff] %vm990, %v970
        %1005 = vst.msk [vmem:[#allocation2 + $0x50] sm:$0xf] %vm992, %v961
        %1006 = vst.msk [vmem:[#allocation2 + $0x54] sm:$0xff] %vm990, %v971
        %1007 = vst.msk [vmem:[#allocation2 + $0x5c] sm:$0xf] %vm992, %v962
        %v1008 = vld [vmem:[%s7] sm:$0xf]
        %v1009 = vld [vmem:[%s7 + $0x4] sm:$0xf]
        %v1010 = vld [vmem:[%s7 + $0x8] sm:$0xf]
        %v1011 = vld [vmem:[%s7 + $0xc] sm:$0xf]
        %v1012 = vld [vmem:[%s7 + $0x10] sm:$0xf]
        %v1013 = vld [vmem:[%s7 + $0x14] sm:$0xf]
        %v1014 = vld [vmem:[%s7 + $0x18] sm:$0xf]
        %v1015 = vld [vmem:[%s7 + $0x1c] sm:$0xf]
        %v1016 = vld [vmem:[%s7 + $0x20] sm:$0xf]
        %v1017 = vld [vmem:[%s7 + $0x24] sm:$0xf]
        %v1018 = vld [vmem:[%s7 + $0x28] sm:$0xf]
        %v1019 = vld [vmem:[%s7 + $0x2c] sm:$0xf]
        %v1020 = vld [vmem:[%s7 + $0x30] sm:$0xf]
        %v1021 = vld [vmem:[%s7 + $0x34] sm:$0xf]
        %v1022 = vld [vmem:[%s7 + $0x38] sm:$0xf]
        %v1023 = vld [vmem:[%s7 + $0x3c] sm:$0xf]
        %v1024 = vld [vmem:[#allocation2] sm:$0xff]
        %v1025 = vld [vmem:[#allocation2 + $0xc] sm:$0xff]
        %v1026 = vld [vmem:[#allocation2 + $0x18] sm:$0xff]
        %v1027 = vld [vmem:[#allocation2 + $0x24] sm:$0xff]
        %v1028 = vld [vmem:[#allocation2 + $0x30] sm:$0xff]
        %v1029 = vld [vmem:[#allocation2 + $0x3c] sm:$0xff]
        %v1030 = vld [vmem:[#allocation2 + $0x48] sm:$0xff]
        %v1031 = vld [vmem:[#allocation2 + $0x54] sm:$0xff]
        %s1032 = scalar_lea.vmem %s7, 64
        %v1033 = vld [vmem:[%s1032] sm:$0xf]
        %v1034 = vld [vmem:[%s1032 + $0x4] sm:$0xf]
        %v1035 = vld [vmem:[%s1032 + $0x8] sm:$0xf]
        %v1036 = vld [vmem:[%s1032 + $0xc] sm:$0xf]
        %v1037 = vld [vmem:[%s1032 + $0x10] sm:$0xf]
        %v1038 = vld [vmem:[%s1032 + $0x14] sm:$0xf]
        %v1039 = vld [vmem:[%s1032 + $0x18] sm:$0xf]
        %v1040 = vld [vmem:[%s1032 + $0x1c] sm:$0xf]
        %v1041 = vld [vmem:[%s1032 + $0x20] sm:$0xf]
        %v1042 = vld [vmem:[%s1032 + $0x24] sm:$0xf]
        %v1043 = vld [vmem:[%s1032 + $0x28] sm:$0xf]
        %v1044 = vld [vmem:[%s1032 + $0x2c] sm:$0xf]
        %v1045 = vld [vmem:[%s1032 + $0x30] sm:$0xf]
        %v1046 = vld [vmem:[%s1032 + $0x34] sm:$0xf]
        %v1047 = vld [vmem:[%s1032 + $0x38] sm:$0xf]
        %v1048 = vld [vmem:[%s1032 + $0x3c] sm:$0xf]
        %v1049 = vld [vmem:[#allocation2 + $0x8] sm:$0xf]
        %v1050 = vld [vmem:[#allocation2 + $0x14] sm:$0xf]
        %v1051 = vld [vmem:[#allocation2 + $0x20] sm:$0xf]
        %v1052 = vld [vmem:[#allocation2 + $0x2c] sm:$0xf]
        %v1053 = vld [vmem:[#allocation2 + $0x38] sm:$0xf]
        %v1054 = vld [vmem:[#allocation2 + $0x44] sm:$0xf]
        %v1055 = vld [vmem:[#allocation2 + $0x50] sm:$0xf]
        %v1056 = vld [vmem:[#allocation2 + $0x5c] sm:$0xf]
        %v1073 = vunpack.c.l.b16 %v1033
        %v1074 = vunpack.c.l.b16 %v1034
        %v1075 = vunpack.c.l.b16 %v1035
        %v1076 = vunpack.c.l.b16 %v1036
        %v1077 = vunpack.c.l.b16 %v1037
        %v1078 = vunpack.c.l.b16 %v1038
        %v1079 = vunpack.c.l.b16 %v1039
        %v1080 = vunpack.c.l.b16 %v1040
        %v1081 = vunpack.c.l.b16 %v1041
        %v1082 = vunpack.c.l.b16 %v1042
        %v1083 = vunpack.c.l.b16 %v1043
        %v1084 = vunpack.c.l.b16 %v1044
        %v1085 = vunpack.c.l.b16 %v1045
        %v1086 = vunpack.c.l.b16 %v1046
        %v1087 = vunpack.c.l.b16 %v1047
        %v1088 = vunpack.c.l.b16 %v1048
        %v1089 = vpack.c.b16 %v1074, %v1073
        %v1090 = vpack.c.b16 %v1076, %v1075
        %v1091 = vpack.c.b16 %v1078, %v1077
        %v1092 = vpack.c.b16 %v1080, %v1079
        %v1093 = vpack.c.b16 %v1082, %v1081
        %v1094 = vpack.c.b16 %v1084, %v1083
        %v1095 = vpack.c.b16 %v1086, %v1085
        %v1096 = vpack.c.b16 %v1088, %v1087
        %v1113 = vunpack.c.l.b16 %v1024
        %v1114 = vunpack.c.h.b16 %v1024
        %v1115 = vunpack.c.l.b16 %v1049
        %v1116 = vunpack.c.l.b16 %v1025
        %v1117 = vunpack.c.h.b16 %v1025
        %v1118 = vunpack.c.l.b16 %v1050
        %v1119 = vunpack.c.l.b16 %v1026
        %v1120 = vunpack.c.h.b16 %v1026
        %v1121 = vunpack.c.l.b16 %v1051
        %v1122 = vunpack.c.l.b16 %v1027
        %v1123 = vunpack.c.h.b16 %v1027
        %v1124 = vunpack.c.l.b16 %v1052
        %v1125 = vunpack.c.l.b16 %v1028
        %v1126 = vunpack.c.h.b16 %v1028
        %v1127 = vunpack.c.l.b16 %v1053
        %v1128 = vunpack.c.l.b16 %v1029
        %v1129 = vunpack.c.h.b16 %v1029
        %v1130 = vunpack.c.l.b16 %v1054
        %v1131 = vunpack.c.l.b16 %v1030
        %v1132 = vunpack.c.h.b16 %v1030
        %v1133 = vunpack.c.l.b16 %v1055
        %v1134 = vunpack.c.l.b16 %v1031
        %v1135 = vunpack.c.h.b16 %v1031
        %v1136 = vunpack.c.l.b16 %v1056
        %v1137 = vpack.c.b16 %v1116, %v1113
        %v1138 = vpack.c.b16 %v1117, %v1114
        %v1139 = vpack.c.b16 %v1118, %v1115
        %v1140 = vpack.c.b16 %v1122, %v1119
        %v1141 = vpack.c.b16 %v1123, %v1120
        %v1142 = vpack.c.b16 %v1124, %v1121
        %v1143 = vpack.c.b16 %v1128, %v1125
        %v1144 = vpack.c.b16 %v1129, %v1126
        %v1145 = vpack.c.b16 %v1130, %v1127
        %v1146 = vpack.c.b16 %v1134, %v1131
        %v1147 = vpack.c.b16 %v1135, %v1132
        %v1148 = vpack.c.b16 %v1136, %v1133
        %1149 = vrot.lane.b32.xlu0 %v1137, 126
        %v1150 = vpop.permute.xlu0 %1149
        %1151 = vrot.lane.b32.xlu0 %v1138, 126
        %v1152 = vpop.permute.xlu0 %1151
        %1153 = vrot.lane.b32.xlu0 %v1139, 126
        %v1154 = vpop.permute.xlu0 %1153
        %1155 = vrot.lane.b32.xlu0 %v1140, 126
        %v1156 = vpop.permute.xlu0 %1155
        %1157 = vrot.lane.b32.xlu0 %v1141, 126
        %v1158 = vpop.permute.xlu0 %1157
        %1159 = vrot.lane.b32.xlu0 %v1142, 126
        %v1160 = vpop.permute.xlu0 %1159
        %1161 = vrot.lane.b32.xlu0 %v1143, 126
        %v1162 = vpop.permute.xlu0 %1161
        %1163 = vrot.lane.b32.xlu0 %v1144, 126
        %v1164 = vpop.permute.xlu0 %1163
        %1165 = vrot.lane.b32.xlu0 %v1145, 126
        %v1166 = vpop.permute.xlu0 %1165
        %1167 = vrot.lane.b32.xlu0 %v1146, 126
        %v1168 = vpop.permute.xlu0 %1167
        %1169 = vrot.lane.b32.xlu0 %v1147, 126
        %v1170 = vpop.permute.xlu0 %1169
        %1171 = vrot.lane.b32.xlu0 %v1148, 126
        %v1172 = vpop.permute.xlu0 %1171
        %vm1173 = vcmask 1031168
        %v1174 = vsel %vm1173, %v1150, %v1152
        %v1175 = vsel %vm1173, %v1152, %v1154
        %v1176 = vsel %vm1173, %v1156, %v1158
        %v1177 = vsel %vm1173, %v1158, %v1160
        %v1178 = vsel %vm1173, %v1162, %v1164
        %v1179 = vsel %vm1173, %v1164, %v1166
        %v1180 = vsel %vm1173, %v1168, %v1170
        %v1181 = vsel %vm1173, %v1170, %v1172
        %vm1190 = vcmask 523264
        %v1192 = vsel %vm1190, %v1089, 0
        %v1195 = vsel %vm1190, %v1090, 0
        %v1198 = vsel %vm1190, %v1091, 0
        %v1201 = vsel %vm1190, %v1092, 0
        %v1204 = vsel %vm1190, %v1093, 0
        %v1207 = vsel %vm1190, %v1094, 0
        %v1210 = vsel %vm1190, %v1095, 0
        %v1213 = vsel %vm1190, %v1096, 0
        %1215 = vmatpush.bf16.msra.mxu0 0
        %1216 = vmatpush.bf16.msra.mxu0 0
        %1217 = vmatpush.bf16.msra.mxu0 0
        %1218 = vmatpush.bf16.msra.mxu0 0
        %1219 = vmatpush.bf16.msra.mxu0 %v1180
        %1220 = vmatpush.bf16.msra.mxu0 %v1178
        %1221 = vmatpush.bf16.msra.mxu0 %v1176
        %1222 = vmatpush.bf16.msra.mxu0 %v1174
        %1223 = vmatmul.bf16.gmra.mxu0 %v1192
        %v1224 = vpop.f32.mrf.mxu0
        %v1225 = vadd.f32 0.0, %v1224
        %v1226 = vpop.f32.mrf.mxu0
        %v1227 = vadd.f32 0.0, %v1226
        %1228 = vmatmul.bf16.gmra.mxu0 %v1195
        %v1229 = vpop.f32.mrf.mxu0
        %v1230 = vadd.f32 0.0, %v1229
        %v1231 = vpop.f32.mrf.mxu0
        %v1232 = vadd.f32 0.0, %v1231
        %1233 = vmatmul.bf16.gmra.mxu0 %v1198
        %v1234 = vpop.f32.mrf.mxu0
        %v1235 = vadd.f32 0.0, %v1234
        %v1236 = vpop.f32.mrf.mxu0
        %v1237 = vadd.f32 0.0, %v1236
        %1238 = vmatmul.bf16.gmra.mxu0 %v1201
        %v1239 = vpop.f32.mrf.mxu0
        %v1240 = vadd.f32 0.0, %v1239
        %v1241 = vpop.f32.mrf.mxu0
        %v1242 = vadd.f32 0.0, %v1241
        %1243 = vmatmul.bf16.gmra.mxu0 %v1204
        %v1244 = vpop.f32.mrf.mxu0
        %v1245 = vadd.f32 0.0, %v1244
        %v1246 = vpop.f32.mrf.mxu0
        %v1247 = vadd.f32 0.0, %v1246
        %1248 = vmatmul.bf16.gmra.mxu0 %v1207
        %v1249 = vpop.f32.mrf.mxu0
        %v1250 = vadd.f32 0.0, %v1249
        %v1251 = vpop.f32.mrf.mxu0
        %v1252 = vadd.f32 0.0, %v1251
        %1253 = vmatmul.bf16.gmra.mxu0 %v1210
        %v1254 = vpop.f32.mrf.mxu0
        %v1255 = vadd.f32 0.0, %v1254
        %v1256 = vpop.f32.mrf.mxu0
        %v1257 = vadd.f32 0.0, %v1256
        %1258 = vmatmul.bf16.gmra.mxu0 %v1213
        %v1259 = vpop.f32.mrf.mxu0
        %v1260 = vadd.f32 0.0, %v1259
        %v1261 = vpop.f32.mrf.mxu0
        %v1262 = vadd.f32 0.0, %v1261
        %1263 = vdwg.mxu0
        %1264 = vmatpush.bf16.msra.mxu0 0
        %1265 = vmatpush.bf16.msra.mxu0 0
        %1266 = vmatpush.bf16.msra.mxu0 0
        %1267 = vmatpush.bf16.msra.mxu0 0
        %1268 = vmatpush.bf16.msra.mxu0 %v1181
        %1269 = vmatpush.bf16.msra.mxu0 %v1179
        %1270 = vmatpush.bf16.msra.mxu0 %v1177
        %1271 = vmatpush.bf16.msra.mxu0 %v1175
        %1272 = vmatmul.bf16.gmra.mxu0 %v1192
        %v1273 = vpop.f32.mrf.mxu0
        %v1274 = vadd.f32 0.0, %v1273
        %v1275 = vpop.f32.mrf.mxu0
        %v1276 = vadd.f32 0.0, %v1275
        %1277 = vmatmul.bf16.gmra.mxu0 %v1195
        %v1278 = vpop.f32.mrf.mxu0
        %v1279 = vadd.f32 0.0, %v1278
        %v1280 = vpop.f32.mrf.mxu0
        %v1281 = vadd.f32 0.0, %v1280
        %1282 = vmatmul.bf16.gmra.mxu0 %v1198
        %v1283 = vpop.f32.mrf.mxu0
        %v1284 = vadd.f32 0.0, %v1283
        %v1285 = vpop.f32.mrf.mxu0
        %v1286 = vadd.f32 0.0, %v1285
        %1287 = vmatmul.bf16.gmra.mxu0 %v1201
        %v1288 = vpop.f32.mrf.mxu0
        %v1289 = vadd.f32 0.0, %v1288
        %v1290 = vpop.f32.mrf.mxu0
        %v1291 = vadd.f32 0.0, %v1290
        %1292 = vmatmul.bf16.gmra.mxu0 %v1204
        %v1293 = vpop.f32.mrf.mxu0
        %v1294 = vadd.f32 0.0, %v1293
        %v1295 = vpop.f32.mrf.mxu0
        %v1296 = vadd.f32 0.0, %v1295
        %1297 = vmatmul.bf16.gmra.mxu0 %v1207
        %v1298 = vpop.f32.mrf.mxu0
        %v1299 = vadd.f32 0.0, %v1298
        %v1300 = vpop.f32.mrf.mxu0
        %v1301 = vadd.f32 0.0, %v1300
        %1302 = vmatmul.bf16.gmra.mxu0 %v1210
        %v1303 = vpop.f32.mrf.mxu0
        %v1304 = vadd.f32 0.0, %v1303
        %v1305 = vpop.f32.mrf.mxu0
        %v1306 = vadd.f32 0.0, %v1305
        %1307 = vmatmul.bf16.gmra.mxu0 %v1213
        %v1308 = vpop.f32.mrf.mxu0
        %v1309 = vadd.f32 0.0, %v1308
        %v1310 = vpop.f32.mrf.mxu0
        %v1311 = vadd.f32 0.0, %v1310
        %1312 = vdwg.mxu0
        %v1329 = vunpack.c.l.b16 %v1008
        %v1330 = vunpack.c.l.b16 %v1009
        %v1331 = vunpack.c.l.b16 %v1010
        %v1332 = vunpack.c.l.b16 %v1011
        %v1333 = vunpack.c.l.b16 %v1012
        %v1334 = vunpack.c.l.b16 %v1013
        %v1335 = vunpack.c.l.b16 %v1014
        %v1336 = vunpack.c.l.b16 %v1015
        %v1337 = vunpack.c.l.b16 %v1016
        %v1338 = vunpack.c.l.b16 %v1017
        %v1339 = vunpack.c.l.b16 %v1018
        %v1340 = vunpack.c.l.b16 %v1019
        %v1341 = vunpack.c.l.b16 %v1020
        %v1342 = vunpack.c.l.b16 %v1021
        %v1343 = vunpack.c.l.b16 %v1022
        %v1344 = vunpack.c.l.b16 %v1023
        %v1345 = vpack.c.b16 %v1330, %v1329
        %v1346 = vpack.c.b16 %v1332, %v1331
        %v1347 = vpack.c.b16 %v1334, %v1333
        %v1348 = vpack.c.b16 %v1336, %v1335
        %v1349 = vpack.c.b16 %v1338, %v1337
        %v1350 = vpack.c.b16 %v1340, %v1339
        %v1351 = vpack.c.b16 %v1342, %v1341
        %v1352 = vpack.c.b16 %v1344, %v1343
        %v1362 = vsel %vm1190, %v1345, 0
        %v1365 = vsel %vm1190, %v1346, 0
        %v1368 = vsel %vm1190, %v1347, 0
        %v1371 = vsel %vm1190, %v1348, 0
        %v1374 = vsel %vm1190, %v1349, 0
        %v1377 = vsel %vm1190, %v1350, 0
        %v1380 = vsel %vm1190, %v1351, 0
        %v1383 = vsel %vm1190, %v1352, 0
        %1385 = vmatpush.bf16.msra.mxu0 0
        %1386 = vmatpush.bf16.msra.mxu0 0
        %1387 = vmatpush.bf16.msra.mxu0 0
        %1388 = vmatpush.bf16.msra.mxu0 0
        %1389 = vmatpush.bf16.msra.mxu0 %v1146
        %1390 = vmatpush.bf16.msra.mxu0 %v1143
        %1391 = vmatpush.bf16.msra.mxu0 %v1140
        %1392 = vmatpush.bf16.msra.mxu0 %v1137
        %1393 = vmatmul.bf16.gmra.mxu0 %v1362
        %v1394 = vpop.f32.mrf.mxu0
        %v1395 = vadd.f32 %v1225, %v1394
        %v1396 = vpop.f32.mrf.mxu0
        %v1397 = vadd.f32 %v1227, %v1396
        %1398 = vmatmul.bf16.gmra.mxu0 %v1365
        %v1399 = vpop.f32.mrf.mxu0
        %v1400 = vadd.f32 %v1230, %v1399
        %v1401 = vpop.f32.mrf.mxu0
        %v1402 = vadd.f32 %v1232, %v1401
        %1403 = vmatmul.bf16.gmra.mxu0 %v1368
        %v1404 = vpop.f32.mrf.mxu0
        %v1405 = vadd.f32 %v1235, %v1404
        %v1406 = vpop.f32.mrf.mxu0
        %v1407 = vadd.f32 %v1237, %v1406
        %1408 = vmatmul.bf16.gmra.mxu0 %v1371
        %v1409 = vpop.f32.mrf.mxu0
        %v1410 = vadd.f32 %v1240, %v1409
        %v1411 = vpop.f32.mrf.mxu0
        %v1412 = vadd.f32 %v1242, %v1411
        %1413 = vmatmul.bf16.gmra.mxu0 %v1374
        %v1414 = vpop.f32.mrf.mxu0
        %v1415 = vadd.f32 %v1245, %v1414
        %v1416 = vpop.f32.mrf.mxu0
        %v1417 = vadd.f32 %v1247, %v1416
        %1418 = vmatmul.bf16.gmra.mxu0 %v1377
        %v1419 = vpop.f32.mrf.mxu0
        %v1420 = vadd.f32 %v1250, %v1419
        %v1421 = vpop.f32.mrf.mxu0
        %v1422 = vadd.f32 %v1252, %v1421
        %1423 = vmatmul.bf16.gmra.mxu0 %v1380
        %v1424 = vpop.f32.mrf.mxu0
        %v1425 = vadd.f32 %v1255, %v1424
        %v1426 = vpop.f32.mrf.mxu0
        %v1427 = vadd.f32 %v1257, %v1426
        %1428 = vmatmul.bf16.gmra.mxu0 %v1383
        %v1429 = vpop.f32.mrf.mxu0
        %v1430 = vadd.f32 %v1260, %v1429
        %v1431 = vpop.f32.mrf.mxu0
        %v1432 = vadd.f32 %v1262, %v1431
        %1433 = vdwg.mxu0
        %1434 = vmatpush.bf16.msra.mxu0 0
        %1435 = vmatpush.bf16.msra.mxu0 0
        %1436 = vmatpush.bf16.msra.mxu0 0
        %1437 = vmatpush.bf16.msra.mxu0 0
        %1438 = vmatpush.bf16.msra.mxu0 %v1147
        %1439 = vmatpush.bf16.msra.mxu0 %v1144
        %1440 = vmatpush.bf16.msra.mxu0 %v1141
        %1441 = vmatpush.bf16.msra.mxu0 %v1138
        %1442 = vmatmul.bf16.gmra.mxu0 %v1362
        %v1443 = vpop.f32.mrf.mxu0
        %v1444 = vadd.f32 %v1274, %v1443
        %v1445 = vpop.f32.mrf.mxu0
        %v1446 = vadd.f32 %v1276, %v1445
        %1447 = vmatmul.bf16.gmra.mxu0 %v1365
        %v1448 = vpop.f32.mrf.mxu0
        %v1449 = vadd.f32 %v1279, %v1448
        %v1450 = vpop.f32.mrf.mxu0
        %v1451 = vadd.f32 %v1281, %v1450
        %1452 = vmatmul.bf16.gmra.mxu0 %v1368
        %v1453 = vpop.f32.mrf.mxu0
        %v1454 = vadd.f32 %v1284, %v1453
        %v1455 = vpop.f32.mrf.mxu0
        %v1456 = vadd.f32 %v1286, %v1455
        %1457 = vmatmul.bf16.gmra.mxu0 %v1371
        %v1458 = vpop.f32.mrf.mxu0
        %v1459 = vadd.f32 %v1289, %v1458
        %v1460 = vpop.f32.mrf.mxu0
        %v1461 = vadd.f32 %v1291, %v1460
        %1462 = vmatmul.bf16.gmra.mxu0 %v1374
        %v1463 = vpop.f32.mrf.mxu0
        %v1464 = vadd.f32 %v1294, %v1463
        %v1465 = vpop.f32.mrf.mxu0
        %v1466 = vadd.f32 %v1296, %v1465
        %1467 = vmatmul.bf16.gmra.mxu0 %v1377
        %v1468 = vpop.f32.mrf.mxu0
        %v1469 = vadd.f32 %v1299, %v1468
        %v1470 = vpop.f32.mrf.mxu0
        %v1471 = vadd.f32 %v1301, %v1470
        %1472 = vmatmul.bf16.gmra.mxu0 %v1380
        %v1473 = vpop.f32.mrf.mxu0
        %v1474 = vadd.f32 %v1304, %v1473
        %v1475 = vpop.f32.mrf.mxu0
        %v1476 = vadd.f32 %v1306, %v1475
        %1477 = vmatmul.bf16.gmra.mxu0 %v1383
        %v1478 = vpop.f32.mrf.mxu0
        %v1479 = vadd.f32 %v1309, %v1478
        %v1480 = vpop.f32.mrf.mxu0
        %v1481 = vadd.f32 %v1311, %v1480
        %1482 = vdwg.mxu0
        %s1483 = scalar_lea.vmem %s7, 128
        %v1484 = vld [vmem:[%s1483] sm:$0xf]
        %v1485 = vld [vmem:[%s1483 + $0x4] sm:$0xf]
        %v1486 = vld [vmem:[%s1483 + $0x8] sm:$0xf]
        %v1487 = vld [vmem:[%s1483 + $0xc] sm:$0xf]
        %v1488 = vld [vmem:[%s1483 + $0x10] sm:$0xf]
        %v1489 = vld [vmem:[%s1483 + $0x14] sm:$0xf]
        %v1490 = vld [vmem:[%s1483 + $0x18] sm:$0xf]
        %v1491 = vld [vmem:[%s1483 + $0x1c] sm:$0xf]
        %v1492 = vld [vmem:[%s1483 + $0x20] sm:$0xf]
        %v1493 = vld [vmem:[%s1483 + $0x24] sm:$0xf]
        %v1494 = vld [vmem:[%s1483 + $0x28] sm:$0xf]
        %v1495 = vld [vmem:[%s1483 + $0x2c] sm:$0xf]
        %v1496 = vld [vmem:[%s1483 + $0x30] sm:$0xf]
        %v1497 = vld [vmem:[%s1483 + $0x34] sm:$0xf]
        %v1498 = vld [vmem:[%s1483 + $0x38] sm:$0xf]
        %v1499 = vld [vmem:[%s1483 + $0x3c] sm:$0xf]
        %v1516 = vunpack.c.l.b16 %v1484
        %v1517 = vunpack.c.l.b16 %v1485
        %v1518 = vunpack.c.l.b16 %v1486
        %v1519 = vunpack.c.l.b16 %v1487
        %v1520 = vunpack.c.l.b16 %v1488
        %v1521 = vunpack.c.l.b16 %v1489
        %v1522 = vunpack.c.l.b16 %v1490
        %v1523 = vunpack.c.l.b16 %v1491
        %v1524 = vunpack.c.l.b16 %v1492
        %v1525 = vunpack.c.l.b16 %v1493
        %v1526 = vunpack.c.l.b16 %v1494
        %v1527 = vunpack.c.l.b16 %v1495
        %v1528 = vunpack.c.l.b16 %v1496
        %v1529 = vunpack.c.l.b16 %v1497
        %v1530 = vunpack.c.l.b16 %v1498
        %v1531 = vunpack.c.l.b16 %v1499
        %v1532 = vpack.c.b16 %v1517, %v1516
        %v1533 = vpack.c.b16 %v1519, %v1518
        %v1534 = vpack.c.b16 %v1521, %v1520
        %v1535 = vpack.c.b16 %v1523, %v1522
        %v1536 = vpack.c.b16 %v1525, %v1524
        %v1537 = vpack.c.b16 %v1527, %v1526
        %v1538 = vpack.c.b16 %v1529, %v1528
        %v1539 = vpack.c.b16 %v1531, %v1530
        %1540 = vrot.lane.b32.xlu0 %v1137, 124
        %v1541 = vpop.permute.xlu0 %1540
        %1542 = vrot.lane.b32.xlu0 %v1138, 124
        %v1543 = vpop.permute.xlu0 %1542
        %1544 = vrot.lane.b32.xlu0 %v1139, 124
        %v1545 = vpop.permute.xlu0 %1544
        %1546 = vrot.lane.b32.xlu0 %v1140, 124
        %v1547 = vpop.permute.xlu0 %1546
        %1548 = vrot.lane.b32.xlu0 %v1141, 124
        %v1549 = vpop.permute.xlu0 %1548
        %1550 = vrot.lane.b32.xlu0 %v1142, 124
        %v1551 = vpop.permute.xlu0 %1550
        %1552 = vrot.lane.b32.xlu0 %v1143, 124
        %v1553 = vpop.permute.xlu0 %1552
        %1554 = vrot.lane.b32.xlu0 %v1144, 124
        %v1555 = vpop.permute.xlu0 %1554
        %1556 = vrot.lane.b32.xlu0 %v1145, 124
        %v1557 = vpop.permute.xlu0 %1556
        %1558 = vrot.lane.b32.xlu0 %v1146, 124
        %v1559 = vpop.permute.xlu0 %1558
        %1560 = vrot.lane.b32.xlu0 %v1147, 124
        %v1561 = vpop.permute.xlu0 %1560
        %1562 = vrot.lane.b32.xlu0 %v1148, 124
        %v1563 = vpop.permute.xlu0 %1562
        %vm1564 = vcmask 1014784
        %v1565 = vsel %vm1564, %v1541, %v1543
        %v1566 = vsel %vm1564, %v1543, %v1545
        %v1567 = vsel %vm1564, %v1547, %v1549
        %v1568 = vsel %vm1564, %v1549, %v1551
        %v1569 = vsel %vm1564, %v1553, %v1555
        %v1570 = vsel %vm1564, %v1555, %v1557
        %v1571 = vsel %vm1564, %v1559, %v1561
        %v1572 = vsel %vm1564, %v1561, %v1563
        %v1582 = vsel %vm1190, %v1532, 0
        %v1585 = vsel %vm1190, %v1533, 0
        %v1588 = vsel %vm1190, %v1534, 0
        %v1591 = vsel %vm1190, %v1535, 0
        %v1594 = vsel %vm1190, %v1536, 0
        %v1597 = vsel %vm1190, %v1537, 0
        %v1600 = vsel %vm1190, %v1538, 0
        %v1603 = vsel %vm1190, %v1539, 0
        %1605 = vmatpush.bf16.msra.mxu0 0
        %1606 = vmatpush.bf16.msra.mxu0 0
        %1607 = vmatpush.bf16.msra.mxu0 0
        %1608 = vmatpush.bf16.msra.mxu0 0
        %1609 = vmatpush.bf16.msra.mxu0 %v1571
        %1610 = vmatpush.bf16.msra.mxu0 %v1569
        %1611 = vmatpush.bf16.msra.mxu0 %v1567
        %1612 = vmatpush.bf16.msra.mxu0 %v1565
        %1613 = vmatmul.bf16.gmra.mxu0 %v1582
        %v1614 = vpop.f32.mrf.mxu0
        %v1615 = vadd.f32 0.0, %v1614
        %v1616 = vpop.f32.mrf.mxu0
        %v1617 = vadd.f32 0.0, %v1616
        %1618 = vmatmul.bf16.gmra.mxu0 %v1585
        %v1619 = vpop.f32.mrf.mxu0
        %v1620 = vadd.f32 0.0, %v1619
        %v1621 = vpop.f32.mrf.mxu0
        %v1622 = vadd.f32 0.0, %v1621
        %1623 = vmatmul.bf16.gmra.mxu0 %v1588
        %v1624 = vpop.f32.mrf.mxu0
        %v1625 = vadd.f32 0.0, %v1624
        %v1626 = vpop.f32.mrf.mxu0
        %v1627 = vadd.f32 0.0, %v1626
        %1628 = vmatmul.bf16.gmra.mxu0 %v1591
        %v1629 = vpop.f32.mrf.mxu0
        %v1630 = vadd.f32 0.0, %v1629
        %v1631 = vpop.f32.mrf.mxu0
        %v1632 = vadd.f32 0.0, %v1631
        %1633 = vmatmul.bf16.gmra.mxu0 %v1594
        %v1634 = vpop.f32.mrf.mxu0
        %v1635 = vadd.f32 0.0, %v1634
        %v1636 = vpop.f32.mrf.mxu0
        %v1637 = vadd.f32 0.0, %v1636
        %1638 = vmatmul.bf16.gmra.mxu0 %v1597
        %v1639 = vpop.f32.mrf.mxu0
        %v1640 = vadd.f32 0.0, %v1639
        %v1641 = vpop.f32.mrf.mxu0
        %v1642 = vadd.f32 0.0, %v1641
        %1643 = vmatmul.bf16.gmra.mxu0 %v1600
        %v1644 = vpop.f32.mrf.mxu0
        %v1645 = vadd.f32 0.0, %v1644
        %v1646 = vpop.f32.mrf.mxu0
        %v1647 = vadd.f32 0.0, %v1646
        %1648 = vmatmul.bf16.gmra.mxu0 %v1603
        %v1649 = vpop.f32.mrf.mxu0
        %v1650 = vadd.f32 0.0, %v1649
        %v1651 = vpop.f32.mrf.mxu0
        %v1652 = vadd.f32 0.0, %v1651
        %1653 = vdwg.mxu0
        %1654 = vmatpush.bf16.msra.mxu0 0
        %1655 = vmatpush.bf16.msra.mxu0 0
        %1656 = vmatpush.bf16.msra.mxu0 0
        %1657 = vmatpush.bf16.msra.mxu0 0
        %1658 = vmatpush.bf16.msra.mxu0 %v1572
        %1659 = vmatpush.bf16.msra.mxu0 %v1570
        %1660 = vmatpush.bf16.msra.mxu0 %v1568
        %1661 = vmatpush.bf16.msra.mxu0 %v1566
        %1662 = vmatmul.bf16.gmra.mxu0 %v1582
        %v1663 = vpop.f32.mrf.mxu0
        %v1664 = vadd.f32 0.0, %v1663
        %v1665 = vpop.f32.mrf.mxu0
        %v1666 = vadd.f32 0.0, %v1665
        %1667 = vmatmul.bf16.gmra.mxu0 %v1585
        %v1668 = vpop.f32.mrf.mxu0
        %v1669 = vadd.f32 0.0, %v1668
        %v1670 = vpop.f32.mrf.mxu0
        %v1671 = vadd.f32 0.0, %v1670
        %1672 = vmatmul.bf16.gmra.mxu0 %v1588
        %v1673 = vpop.f32.mrf.mxu0
        %v1674 = vadd.f32 0.0, %v1673
        %v1675 = vpop.f32.mrf.mxu0
        %v1676 = vadd.f32 0.0, %v1675
        %1677 = vmatmul.bf16.gmra.mxu0 %v1591
        %v1678 = vpop.f32.mrf.mxu0
        %v1679 = vadd.f32 0.0, %v1678
        %v1680 = vpop.f32.mrf.mxu0
        %v1681 = vadd.f32 0.0, %v1680
        %1682 = vmatmul.bf16.gmra.mxu0 %v1594
        %v1683 = vpop.f32.mrf.mxu0
        %v1684 = vadd.f32 0.0, %v1683
        %v1685 = vpop.f32.mrf.mxu0
        %v1686 = vadd.f32 0.0, %v1685
        %1687 = vmatmul.bf16.gmra.mxu0 %v1597
        %v1688 = vpop.f32.mrf.mxu0
        %v1689 = vadd.f32 0.0, %v1688
        %v1690 = vpop.f32.mrf.mxu0
        %v1691 = vadd.f32 0.0, %v1690
        %1692 = vmatmul.bf16.gmra.mxu0 %v1600
        %v1693 = vpop.f32.mrf.mxu0
        %v1694 = vadd.f32 0.0, %v1693
        %v1695 = vpop.f32.mrf.mxu0
        %v1696 = vadd.f32 0.0, %v1695
        %1697 = vmatmul.bf16.gmra.mxu0 %v1603
        %v1698 = vpop.f32.mrf.mxu0
        %v1699 = vadd.f32 0.0, %v1698
        %v1700 = vpop.f32.mrf.mxu0
        %v1701 = vadd.f32 0.0, %v1700
        %1702 = vdwg.mxu0
        %v1703 = vadd.f32 %v1395, %v1615
        %v1704 = vadd.f32 %v1444, %v1664
        %v1705 = vadd.f32 %v1397, %v1617
        %v1706 = vadd.f32 %v1446, %v1666
        %v1707 = vadd.f32 %v1400, %v1620
        %v1708 = vadd.f32 %v1449, %v1669
        %v1709 = vadd.f32 %v1402, %v1622
        %v1710 = vadd.f32 %v1451, %v1671
        %v1711 = vadd.f32 %v1405, %v1625
        %v1712 = vadd.f32 %v1454, %v1674
        %v1713 = vadd.f32 %v1407, %v1627
        %v1714 = vadd.f32 %v1456, %v1676
        %v1715 = vadd.f32 %v1410, %v1630
        %v1716 = vadd.f32 %v1459, %v1679
        %v1717 = vadd.f32 %v1412, %v1632
        %v1718 = vadd.f32 %v1461, %v1681
        %v1719 = vadd.f32 %v1415, %v1635
        %v1720 = vadd.f32 %v1464, %v1684
        %v1721 = vadd.f32 %v1417, %v1637
        %v1722 = vadd.f32 %v1466, %v1686
        %v1723 = vadd.f32 %v1420, %v1640
        %v1724 = vadd.f32 %v1469, %v1689
        %v1725 = vadd.f32 %v1422, %v1642
        %v1726 = vadd.f32 %v1471, %v1691
        %v1727 = vadd.f32 %v1425, %v1645
        %v1728 = vadd.f32 %v1474, %v1694
        %v1729 = vadd.f32 %v1427, %v1647
        %v1730 = vadd.f32 %v1476, %v1696
        %v1731 = vadd.f32 %v1430, %v1650
        %v1732 = vadd.f32 %v1479, %v1699
        %v1733 = vadd.f32 %v1432, %v1652
        %v1734 = vadd.f32 %v1481, %v1701
        %v1735 = vld [vmem:[%s8] sm:$0xff]
        %v1736 = vld [vmem:[%s8 + $0x8] sm:$0xff]
        %v1737 = vld [vmem:[%s8 + $0x10] sm:$0xff]
        %v1738 = vld [vmem:[%s8 + $0x18] sm:$0xff]
        %v1739 = vld [vmem:[%s8 + $0x20] sm:$0xff]
        %v1740 = vld [vmem:[%s8 + $0x28] sm:$0xff]
        %v1741 = vld [vmem:[%s8 + $0x30] sm:$0xff]
        %v1742 = vld [vmem:[%s8 + $0x38] sm:$0xff]
        %v1743 = vld [vmem:[%s8 + $0x40] sm:$0xff]
        %v1744 = vld [vmem:[%s8 + $0x48] sm:$0xff]
        %v1745 = vld [vmem:[%s8 + $0x50] sm:$0xff]
        %v1746 = vld [vmem:[%s8 + $0x58] sm:$0xff]
        %v1747 = vld [vmem:[%s8 + $0x60] sm:$0xff]
        %v1748 = vld [vmem:[%s8 + $0x68] sm:$0xff]
        %v1749 = vld [vmem:[%s8 + $0x70] sm:$0xff]
        %v1750 = vld [vmem:[%s8 + $0x78] sm:$0xff]
        %1752 = vset.pattern.permute.xlu0 0
        %1753 = vperm.xlu0 %1752, %v1735
        %v1754 = vpop.permute.xlu0 %1753
        %1757 = vset.pattern.permute.xlu0 0
        %1758 = vperm.xlu0 %1757, %v1736
        %v1759 = vpop.permute.xlu0 %1758
        %1762 = vset.pattern.permute.xlu0 0
        %1763 = vperm.xlu0 %1762, %v1737
        %v1764 = vpop.permute.xlu0 %1763
        %1767 = vset.pattern.permute.xlu0 0
        %1768 = vperm.xlu0 %1767, %v1738
        %v1769 = vpop.permute.xlu0 %1768
        %1772 = vset.pattern.permute.xlu0 0
        %1773 = vperm.xlu0 %1772, %v1739
        %v1774 = vpop.permute.xlu0 %1773
        %1777 = vset.pattern.permute.xlu0 0
        %1778 = vperm.xlu0 %1777, %v1740
        %v1779 = vpop.permute.xlu0 %1778
        %1782 = vset.pattern.permute.xlu0 0
        %1783 = vperm.xlu0 %1782, %v1741
        %v1784 = vpop.permute.xlu0 %1783
        %1787 = vset.pattern.permute.xlu0 0
        %1788 = vperm.xlu0 %1787, %v1742
        %v1789 = vpop.permute.xlu0 %1788
        %1792 = vset.pattern.permute.xlu0 0
        %1793 = vperm.xlu0 %1792, %v1743
        %v1794 = vpop.permute.xlu0 %1793
        %1797 = vset.pattern.permute.xlu0 0
        %1798 = vperm.xlu0 %1797, %v1744
        %v1799 = vpop.permute.xlu0 %1798
        %1802 = vset.pattern.permute.xlu0 0
        %1803 = vperm.xlu0 %1802, %v1745
        %v1804 = vpop.permute.xlu0 %1803
        %1807 = vset.pattern.permute.xlu0 0
        %1808 = vperm.xlu0 %1807, %v1746
        %v1809 = vpop.permute.xlu0 %1808
        %1812 = vset.pattern.permute.xlu0 0
        %1813 = vperm.xlu0 %1812, %v1747
        %v1814 = vpop.permute.xlu0 %1813
        %1817 = vset.pattern.permute.xlu0 0
        %1818 = vperm.xlu0 %1817, %v1748
        %v1819 = vpop.permute.xlu0 %1818
        %1822 = vset.pattern.permute.xlu0 0
        %1823 = vperm.xlu0 %1822, %v1749
        %v1824 = vpop.permute.xlu0 %1823
        %1827 = vset.pattern.permute.xlu0 0
        %1828 = vperm.xlu0 %1827, %v1750
        %v1829 = vpop.permute.xlu0 %1828
        %v1831 = vadd.f32 %v1703, %v1754
        %v1832 = vadd.f32 %v1704, %v1754
        %v1833 = vadd.f32 %v1705, %v1759
        %v1834 = vadd.f32 %v1706, %v1759
        %v1835 = vadd.f32 %v1707, %v1764
        %v1836 = vadd.f32 %v1708, %v1764
        %v1837 = vadd.f32 %v1709, %v1769
        %v1838 = vadd.f32 %v1710, %v1769
        %v1839 = vadd.f32 %v1711, %v1774
        %v1840 = vadd.f32 %v1712, %v1774
        %v1841 = vadd.f32 %v1713, %v1779
        %v1842 = vadd.f32 %v1714, %v1779
        %v1843 = vadd.f32 %v1715, %v1784
        %v1844 = vadd.f32 %v1716, %v1784
        %v1845 = vadd.f32 %v1717, %v1789
        %v1846 = vadd.f32 %v1718, %v1789
        %v1847 = vadd.f32 %v1719, %v1794
        %v1848 = vadd.f32 %v1720, %v1794
        %v1849 = vadd.f32 %v1721, %v1799
        %v1850 = vadd.f32 %v1722, %v1799
        %v1851 = vadd.f32 %v1723, %v1804
        %v1852 = vadd.f32 %v1724, %v1804
        %v1853 = vadd.f32 %v1725, %v1809
        %v1854 = vadd.f32 %v1726, %v1809
        %v1855 = vadd.f32 %v1727, %v1814
        %v1856 = vadd.f32 %v1728, %v1814
        %v1857 = vadd.f32 %v1729, %v1819
        %v1858 = vadd.f32 %v1730, %v1819
        %v1859 = vadd.f32 %v1731, %v1824
        %v1860 = vadd.f32 %v1732, %v1824
        %v1861 = vadd.f32 %v1733, %v1829
        %v1862 = vadd.f32 %v1734, %v1829
        %v1863 = vld [vmem:[%s5] sm:$0xf]
        %v1864 = vld [vmem:[%s5 + $0x4] sm:$0xf]
        %v1865 = vld [vmem:[%s5 + $0x8] sm:$0xf]
        %v1866 = vld [vmem:[%s5 + $0xc] sm:$0xf]
        %v1867 = vld [vmem:[%s5 + $0x10] sm:$0xf]
        %v1868 = vld [vmem:[%s5 + $0x14] sm:$0xf]
        %v1869 = vld [vmem:[%s5 + $0x18] sm:$0xf]
        %v1870 = vld [vmem:[%s5 + $0x1c] sm:$0xf]
        %v1871 = vld [vmem:[%s5 + $0x20] sm:$0xf]
        %v1872 = vld [vmem:[%s5 + $0x24] sm:$0xf]
        %v1873 = vld [vmem:[%s5 + $0x28] sm:$0xf]
        %v1874 = vld [vmem:[%s5 + $0x2c] sm:$0xf]
        %v1875 = vld [vmem:[%s5 + $0x30] sm:$0xf]
        %v1876 = vld [vmem:[%s5 + $0x34] sm:$0xf]
        %v1877 = vld [vmem:[%s5 + $0x38] sm:$0xf]
        %v1878 = vld [vmem:[%s5 + $0x3c] sm:$0xf]
        %v1879 = vld [vmem:[%s511] sm:$0xff]
        %v1880 = vld [vmem:[%s511 + $0x8] sm:$0xff]
        %v1881 = vld [vmem:[%s511 + $0x10] sm:$0xff]
        %v1882 = vld [vmem:[%s511 + $0x18] sm:$0xff]
        %v1883 = vpack.c.bf16 %v1881, %v1879
        %v1884 = vpack.c.bf16 %v1882, %v1880
        %v1901 = vunpack.c.l.b16 %v1863
        %v1902 = vunpack.c.l.b16 %v1864
        %v1903 = vunpack.c.l.b16 %v1865
        %v1904 = vunpack.c.l.b16 %v1866
        %v1905 = vunpack.c.l.b16 %v1867
        %v1906 = vunpack.c.l.b16 %v1868
        %v1907 = vunpack.c.l.b16 %v1869
        %v1908 = vunpack.c.l.b16 %v1870
        %v1909 = vunpack.c.l.b16 %v1871
        %v1910 = vunpack.c.l.b16 %v1872
        %v1911 = vunpack.c.l.b16 %v1873
        %v1912 = vunpack.c.l.b16 %v1874
        %v1913 = vunpack.c.l.b16 %v1875
        %v1914 = vunpack.c.l.b16 %v1876
        %v1915 = vunpack.c.l.b16 %v1877
        %v1916 = vunpack.c.l.b16 %v1878
        %v1917 = vpack.c.b16 %v1902, %v1901
        %v1918 = vpack.c.b16 %v1904, %v1903
        %v1919 = vpack.c.b16 %v1906, %v1905
        %v1920 = vpack.c.b16 %v1908, %v1907
        %v1921 = vpack.c.b16 %v1910, %v1909
        %v1922 = vpack.c.b16 %v1912, %v1911
        %v1923 = vpack.c.b16 %v1914, %v1913
        %v1924 = vpack.c.b16 %v1916, %v1915
        %vm1925 = vcmask 130048
        %v1927 = vsel %vm1925, %v1917, 0
        %v1930 = vsel %vm1925, %v1918, 0
        %v1933 = vsel %vm1925, %v1919, 0
        %v1936 = vsel %vm1925, %v1920, 0
        %v1939 = vsel %vm1925, %v1921, 0
        %v1942 = vsel %vm1925, %v1922, 0
        %v1945 = vsel %vm1925, %v1923, 0
        %v1948 = vsel %vm1925, %v1924, 0
        %1950 = vmatpush.bf16.msra.mxu0 0
        %1951 = vmatpush.bf16.msra.mxu0 0
        %1952 = vmatpush.bf16.msra.mxu0 0
        %1953 = vmatpush.bf16.msra.mxu0 0
        %1954 = vmatpush.bf16.msra.mxu0 0
        %1955 = vmatpush.bf16.msra.mxu0 0
        %1956 = vmatpush.bf16.msra.mxu0 0
        %1957 = vmatpush.bf16.msra.mxu0 %v1883
        %1958 = vmatmul.bf16.gmra.mxu0 %v1927
        %v1959 = vpop.f32.mrf.mxu0
        %v1960 = vadd.f32 0.0, %v1959
        %v1961 = vpop.f32.mrf.mxu0
        %v1962 = vadd.f32 0.0, %v1961
        %1963 = vmatmul.bf16.gmra.mxu0 %v1930
        %v1964 = vpop.f32.mrf.mxu0
        %v1965 = vadd.f32 0.0, %v1964
        %v1966 = vpop.f32.mrf.mxu0
        %v1967 = vadd.f32 0.0, %v1966
        %1968 = vmatmul.bf16.gmra.mxu0 %v1933
        %v1969 = vpop.f32.mrf.mxu0
        %v1970 = vadd.f32 0.0, %v1969
        %v1971 = vpop.f32.mrf.mxu0
        %v1972 = vadd.f32 0.0, %v1971
        %1973 = vmatmul.bf16.gmra.mxu0 %v1936
        %v1974 = vpop.f32.mrf.mxu0
        %v1975 = vadd.f32 0.0, %v1974
        %v1976 = vpop.f32.mrf.mxu0
        %v1977 = vadd.f32 0.0, %v1976
        %1978 = vmatmul.bf16.gmra.mxu0 %v1939
        %v1979 = vpop.f32.mrf.mxu0
        %v1980 = vadd.f32 0.0, %v1979
        %v1981 = vpop.f32.mrf.mxu0
        %v1982 = vadd.f32 0.0, %v1981
        %1983 = vmatmul.bf16.gmra.mxu0 %v1942
        %v1984 = vpop.f32.mrf.mxu0
        %v1985 = vadd.f32 0.0, %v1984
        %v1986 = vpop.f32.mrf.mxu0
        %v1987 = vadd.f32 0.0, %v1986
        %1988 = vmatmul.bf16.gmra.mxu0 %v1945
        %v1989 = vpop.f32.mrf.mxu0
        %v1990 = vadd.f32 0.0, %v1989
        %v1991 = vpop.f32.mrf.mxu0
        %v1992 = vadd.f32 0.0, %v1991
        %1993 = vmatmul.bf16.gmra.mxu0 %v1948
        %v1994 = vpop.f32.mrf.mxu0
        %v1995 = vadd.f32 0.0, %v1994
        %v1996 = vpop.f32.mrf.mxu0
        %v1997 = vadd.f32 0.0, %v1996
        %1998 = vdwg.mxu0
        %1999 = vmatpush.bf16.msra.mxu0 0
        %2000 = vmatpush.bf16.msra.mxu0 0
        %2001 = vmatpush.bf16.msra.mxu0 0
        %2002 = vmatpush.bf16.msra.mxu0 0
        %2003 = vmatpush.bf16.msra.mxu0 0
        %2004 = vmatpush.bf16.msra.mxu0 0
        %2005 = vmatpush.bf16.msra.mxu0 0
        %2006 = vmatpush.bf16.msra.mxu0 %v1884
        %2007 = vmatmul.bf16.gmra.mxu0 %v1927
        %v2008 = vpop.f32.mrf.mxu0
        %v2009 = vadd.f32 0.0, %v2008
        %v2010 = vpop.f32.mrf.mxu0
        %v2011 = vadd.f32 0.0, %v2010
        %2012 = vmatmul.bf16.gmra.mxu0 %v1930
        %v2013 = vpop.f32.mrf.mxu0
        %v2014 = vadd.f32 0.0, %v2013
        %v2015 = vpop.f32.mrf.mxu0
        %v2016 = vadd.f32 0.0, %v2015
        %2017 = vmatmul.bf16.gmra.mxu0 %v1933
        %v2018 = vpop.f32.mrf.mxu0
        %v2019 = vadd.f32 0.0, %v2018
        %v2020 = vpop.f32.mrf.mxu0
        %v2021 = vadd.f32 0.0, %v2020
        %2022 = vmatmul.bf16.gmra.mxu0 %v1936
        %v2023 = vpop.f32.mrf.mxu0
        %v2024 = vadd.f32 0.0, %v2023
        %v2025 = vpop.f32.mrf.mxu0
        %v2026 = vadd.f32 0.0, %v2025
        %2027 = vmatmul.bf16.gmra.mxu0 %v1939
        %v2028 = vpop.f32.mrf.mxu0
        %v2029 = vadd.f32 0.0, %v2028
        %v2030 = vpop.f32.mrf.mxu0
        %v2031 = vadd.f32 0.0, %v2030
        %2032 = vmatmul.bf16.gmra.mxu0 %v1942
        %v2033 = vpop.f32.mrf.mxu0
        %v2034 = vadd.f32 0.0, %v2033
        %v2035 = vpop.f32.mrf.mxu0
        %v2036 = vadd.f32 0.0, %v2035
        %2037 = vmatmul.bf16.gmra.mxu0 %v1945
        %v2038 = vpop.f32.mrf.mxu0
        %v2039 = vadd.f32 0.0, %v2038
        %v2040 = vpop.f32.mrf.mxu0
        %v2041 = vadd.f32 0.0, %v2040
        %2042 = vmatmul.bf16.gmra.mxu0 %v1948
        %v2043 = vpop.f32.mrf.mxu0
        %v2044 = vadd.f32 0.0, %v2043
        %v2045 = vpop.f32.mrf.mxu0
        %v2046 = vadd.f32 0.0, %v2045
        %2047 = vdwg.mxu0
        %v2048 = vadd.f32 %v1831, %v1960
        %v2049 = vadd.f32 %v1832, %v2009
        %v2050 = vadd.f32 %v1833, %v1962
        %v2051 = vadd.f32 %v1834, %v2011
        %v2052 = vadd.f32 %v1835, %v1965
        %v2053 = vadd.f32 %v1836, %v2014
        %v2054 = vadd.f32 %v1837, %v1967
        %v2055 = vadd.f32 %v1838, %v2016
        %v2056 = vadd.f32 %v1839, %v1970
        %v2057 = vadd.f32 %v1840, %v2019
        %v2058 = vadd.f32 %v1841, %v1972
        %v2059 = vadd.f32 %v1842, %v2021
        %v2060 = vadd.f32 %v1843, %v1975
        %v2061 = vadd.f32 %v1844, %v2024
        %v2062 = vadd.f32 %v1845, %v1977
        %v2063 = vadd.f32 %v1846, %v2026
        %v2064 = vadd.f32 %v1847, %v1980
        %v2065 = vadd.f32 %v1848, %v2029
        %v2066 = vadd.f32 %v1849, %v1982
        %v2067 = vadd.f32 %v1850, %v2031
        %v2068 = vadd.f32 %v1851, %v1985
        %v2069 = vadd.f32 %v1852, %v2034
        %v2070 = vadd.f32 %v1853, %v1987
        %v2071 = vadd.f32 %v1854, %v2036
        %v2072 = vadd.f32 %v1855, %v1990
        %v2073 = vadd.f32 %v1856, %v2039
        %v2074 = vadd.f32 %v1857, %v1992
        %v2075 = vadd.f32 %v1858, %v2041
        %v2076 = vadd.f32 %v1859, %v1995
        %v2077 = vadd.f32 %v1860, %v2044
        %v2078 = vadd.f32 %v1861, %v1997
        %v2079 = vadd.f32 %v1862, %v2046
        %v2080 = vld [vmem:[%s6] sm:$0xff]
        %v2081 = vld [vmem:[%s6 + $0x8] sm:$0xff]
        %v2082 = vld [vmem:[%s6 + $0x10] sm:$0xff]
        %v2083 = vld [vmem:[%s6 + $0x18] sm:$0xff]
        %v2084 = vld [vmem:[%s6 + $0x20] sm:$0xff]
        %v2085 = vld [vmem:[%s6 + $0x28] sm:$0xff]
        %v2086 = vld [vmem:[%s6 + $0x30] sm:$0xff]
        %v2087 = vld [vmem:[%s6 + $0x38] sm:$0xff]
        %v2088 = vld [vmem:[%s6 + $0x40] sm:$0xff]
        %v2089 = vld [vmem:[%s6 + $0x48] sm:$0xff]
        %v2090 = vld [vmem:[%s6 + $0x50] sm:$0xff]
        %v2091 = vld [vmem:[%s6 + $0x58] sm:$0xff]
        %v2092 = vld [vmem:[%s6 + $0x60] sm:$0xff]
        %v2093 = vld [vmem:[%s6 + $0x68] sm:$0xff]
        %v2094 = vld [vmem:[%s6 + $0x70] sm:$0xff]
        %v2095 = vld [vmem:[%s6 + $0x78] sm:$0xff]
        %2097 = vset.pattern.permute.xlu0 0
        %2098 = vperm.xlu0 %2097, %v2080
        %v2099 = vpop.permute.xlu0 %2098
        %2102 = vset.pattern.permute.xlu0 0
        %2103 = vperm.xlu0 %2102, %v2081
        %v2104 = vpop.permute.xlu0 %2103
        %2107 = vset.pattern.permute.xlu0 0
        %2108 = vperm.xlu0 %2107, %v2082
        %v2109 = vpop.permute.xlu0 %2108
        %2112 = vset.pattern.permute.xlu0 0
        %2113 = vperm.xlu0 %2112, %v2083
        %v2114 = vpop.permute.xlu0 %2113
        %2117 = vset.pattern.permute.xlu0 0
        %2118 = vperm.xlu0 %2117, %v2084
        %v2119 = vpop.permute.xlu0 %2118
        %2122 = vset.pattern.permute.xlu0 0
        %2123 = vperm.xlu0 %2122, %v2085
        %v2124 = vpop.permute.xlu0 %2123
        %2127 = vset.pattern.permute.xlu0 0
        %2128 = vperm.xlu0 %2127, %v2086
        %v2129 = vpop.permute.xlu0 %2128
        %2132 = vset.pattern.permute.xlu0 0
        %2133 = vperm.xlu0 %2132, %v2087
        %v2134 = vpop.permute.xlu0 %2133
        %2137 = vset.pattern.permute.xlu0 0
        %2138 = vperm.xlu0 %2137, %v2088
        %v2139 = vpop.permute.xlu0 %2138
        %2142 = vset.pattern.permute.xlu0 0
        %2143 = vperm.xlu0 %2142, %v2089
        %v2144 = vpop.permute.xlu0 %2143
        %2147 = vset.pattern.permute.xlu0 0
        %2148 = vperm.xlu0 %2147, %v2090
        %v2149 = vpop.permute.xlu0 %2148
        %2152 = vset.pattern.permute.xlu0 0
        %2153 = vperm.xlu0 %2152, %v2091
        %v2154 = vpop.permute.xlu0 %2153
        %2157 = vset.pattern.permute.xlu0 0
        %2158 = vperm.xlu0 %2157, %v2092
        %v2159 = vpop.permute.xlu0 %2158
        %2162 = vset.pattern.permute.xlu0 0
        %2163 = vperm.xlu0 %2162, %v2093
        %v2164 = vpop.permute.xlu0 %2163
        %2167 = vset.pattern.permute.xlu0 0
        %2168 = vperm.xlu0 %2167, %v2094
        %v2169 = vpop.permute.xlu0 %2168
        %2172 = vset.pattern.permute.xlu0 0
        %2173 = vperm.xlu0 %2172, %v2095
        %v2174 = vpop.permute.xlu0 %2173
        %v2176 = vadd.f32 %v2048, %v2099
        %v2177 = vadd.f32 %v2049, %v2099
        %v2178 = vadd.f32 %v2050, %v2104
        %v2179 = vadd.f32 %v2051, %v2104
        %v2180 = vadd.f32 %v2052, %v2109
        %v2181 = vadd.f32 %v2053, %v2109
        %v2182 = vadd.f32 %v2054, %v2114
        %v2183 = vadd.f32 %v2055, %v2114
        %v2184 = vadd.f32 %v2056, %v2119
        %v2185 = vadd.f32 %v2057, %v2119
        %v2186 = vadd.f32 %v2058, %v2124
        %v2187 = vadd.f32 %v2059, %v2124
        %v2188 = vadd.f32 %v2060, %v2129
        %v2189 = vadd.f32 %v2061, %v2129
        %v2190 = vadd.f32 %v2062, %v2134
        %v2191 = vadd.f32 %v2063, %v2134
        %v2192 = vadd.f32 %v2064, %v2139
        %v2193 = vadd.f32 %v2065, %v2139
        %v2194 = vadd.f32 %v2066, %v2144
        %v2195 = vadd.f32 %v2067, %v2144
        %v2196 = vadd.f32 %v2068, %v2149
        %v2197 = vadd.f32 %v2069, %v2149
        %v2198 = vadd.f32 %v2070, %v2154
        %v2199 = vadd.f32 %v2071, %v2154
        %v2200 = vadd.f32 %v2072, %v2159
        %v2201 = vadd.f32 %v2073, %v2159
        %v2202 = vadd.f32 %v2074, %v2164
        %v2203 = vadd.f32 %v2075, %v2164
        %v2204 = vadd.f32 %v2076, %v2169
        %v2205 = vadd.f32 %v2077, %v2169
        %v2206 = vadd.f32 %v2078, %v2174
        %v2207 = vadd.f32 %v2079, %v2174
        %v2208 = vxor.u32 %v2176, 2147483648
        %v2209 = vxor.u32 %v2177, 2147483648
        %v2210 = vxor.u32 %v2178, 2147483648
        %v2211 = vxor.u32 %v2179, 2147483648
        %v2212 = vxor.u32 %v2180, 2147483648
        %v2213 = vxor.u32 %v2181, 2147483648
        %v2214 = vxor.u32 %v2182, 2147483648
        %v2215 = vxor.u32 %v2183, 2147483648
        %v2216 = vxor.u32 %v2184, 2147483648
        %v2217 = vxor.u32 %v2185, 2147483648
        %v2218 = vxor.u32 %v2186, 2147483648
        %v2219 = vxor.u32 %v2187, 2147483648
        %v2220 = vxor.u32 %v2188, 2147483648
        %v2221 = vxor.u32 %v2189, 2147483648
        %v2222 = vxor.u32 %v2190, 2147483648
        %v2223 = vxor.u32 %v2191, 2147483648
        %v2224 = vmul.f32 %v2208, 1.442695
        %v2225 = vpow.pop %v2224
        %v2226 = vmul.f32 %v2209, 1.442695
        %v2227 = vpow.pop %v2226
        %v2228 = vmul.f32 %v2210, 1.442695
        %v2229 = vpow.pop %v2228
        %v2230 = vmul.f32 %v2211, 1.442695
        %v2231 = vpow.pop %v2230
        %v2232 = vmul.f32 %v2212, 1.442695
        %v2233 = vpow.pop %v2232
        %v2234 = vmul.f32 %v2213, 1.442695
        %v2235 = vpow.pop %v2234
        %v2236 = vmul.f32 %v2214, 1.442695
        %v2237 = vpow.pop %v2236
        %v2238 = vmul.f32 %v2215, 1.442695
        %v2239 = vpow.pop %v2238
        %v2240 = vmul.f32 %v2216, 1.442695
        %v2241 = vpow.pop %v2240
        %v2242 = vmul.f32 %v2217, 1.442695
        %v2243 = vpow.pop %v2242
        %v2244 = vmul.f32 %v2218, 1.442695
        %v2245 = vpow.pop %v2244
        %v2246 = vmul.f32 %v2219, 1.442695
        %v2247 = vpow.pop %v2246
        %v2248 = vmul.f32 %v2220, 1.442695
        %v2249 = vpow.pop %v2248
        %v2250 = vmul.f32 %v2221, 1.442695
        %v2251 = vpow.pop %v2250
        %v2252 = vmul.f32 %v2222, 1.442695
        %v2253 = vpow.pop %v2252
        %v2254 = vmul.f32 %v2223, 1.442695
        %v2255 = vpow.pop %v2254
        %v2256 = vadd.f32 %v2225, 1.0
        %v2257 = vadd.f32 %v2227, 1.0
        %v2258 = vadd.f32 %v2229, 1.0
        %v2259 = vadd.f32 %v2231, 1.0
        %v2260 = vadd.f32 %v2233, 1.0
        %v2261 = vadd.f32 %v2235, 1.0
        %v2262 = vadd.f32 %v2237, 1.0
        %v2263 = vadd.f32 %v2239, 1.0
        %v2264 = vadd.f32 %v2241, 1.0
        %v2265 = vadd.f32 %v2243, 1.0
        %v2266 = vadd.f32 %v2245, 1.0
        %v2267 = vadd.f32 %v2247, 1.0
        %v2268 = vadd.f32 %v2249, 1.0
        %v2269 = vadd.f32 %v2251, 1.0
        %v2270 = vadd.f32 %v2253, 1.0
        %v2271 = vadd.f32 %v2255, 1.0
        %v2272 = vrcp.pop %v2256
        %v2273 = vmul.f32 %v2256, %v2272
        %v2274 = vsub.f32 1.0, %v2273
        %v2275 = vmul.f32 %v2272, %v2274
        %v2276 = vadd.f32 %v2272, %v2275
        %vm2277 = vweird.f32 %v2256
        %vm2278 = vweird.f32 %v2272
        %vm2279 = vmor %vm2277, %vm2278
        %v2280 = vsel %vm2279, %v2272, %v2276
        %v2281 = vand.u32 2147483647, %v2256
        %vm2282 = vcmp.eq.f32.partialorder %v2281, 8.507059e+37
        %v2283 = vand.u32 %v2256, 2147483648
        %v2284 = vor.u32 1.1754944e-38, %v2283
        %v2285 = vsel %vm2282, %v2284, %v2280
        %v2286 = vmul.f32 1.0, %v2285
        %v2287 = vrcp.pop %v2257
        %v2288 = vmul.f32 %v2257, %v2287
        %v2289 = vsub.f32 1.0, %v2288
        %v2290 = vmul.f32 %v2287, %v2289
        %v2291 = vadd.f32 %v2287, %v2290
        %vm2292 = vweird.f32 %v2257
        %vm2293 = vweird.f32 %v2287
        %vm2294 = vmor %vm2292, %vm2293
        %v2295 = vsel %vm2294, %v2287, %v2291
        %v2296 = vand.u32 2147483647, %v2257
        %vm2297 = vcmp.eq.f32.partialorder %v2296, 8.507059e+37
        %v2298 = vand.u32 %v2257, 2147483648
        %v2299 = vor.u32 1.1754944e-38, %v2298
        %v2300 = vsel %vm2297, %v2299, %v2295
        %v2301 = vmul.f32 1.0, %v2300
        %v2302 = vrcp.pop %v2258
        %v2303 = vmul.f32 %v2258, %v2302
        %v2304 = vsub.f32 1.0, %v2303
        %v2305 = vmul.f32 %v2302, %v2304
        %v2306 = vadd.f32 %v2302, %v2305
        %vm2307 = vweird.f32 %v2258
        %vm2308 = vweird.f32 %v2302
        %vm2309 = vmor %vm2307, %vm2308
        %v2310 = vsel %vm2309, %v2302, %v2306
        %v2311 = vand.u32 2147483647, %v2258
        %vm2312 = vcmp.eq.f32.partialorder %v2311, 8.507059e+37
        %v2313 = vand.u32 %v2258, 2147483648
        %v2314 = vor.u32 1.1754944e-38, %v2313
        %v2315 = vsel %vm2312, %v2314, %v2310
        %v2316 = vmul.f32 1.0, %v2315
        %v2317 = vrcp.pop %v2259
        %v2318 = vmul.f32 %v2259, %v2317
        %v2319 = vsub.f32 1.0, %v2318
        %v2320 = vmul.f32 %v2317, %v2319
        %v2321 = vadd.f32 %v2317, %v2320
        %vm2322 = vweird.f32 %v2259
        %vm2323 = vweird.f32 %v2317
        %vm2324 = vmor %vm2322, %vm2323
        %v2325 = vsel %vm2324, %v2317, %v2321
        %v2326 = vand.u32 2147483647, %v2259
        %vm2327 = vcmp.eq.f32.partialorder %v2326, 8.507059e+37
        %v2328 = vand.u32 %v2259, 2147483648
        %v2329 = vor.u32 1.1754944e-38, %v2328
        %v2330 = vsel %vm2327, %v2329, %v2325
        %v2331 = vmul.f32 1.0, %v2330
        %v2332 = vrcp.pop %v2260
        %v2333 = vmul.f32 %v2260, %v2332
        %v2334 = vsub.f32 1.0, %v2333
        %v2335 = vmul.f32 %v2332, %v2334
        %v2336 = vadd.f32 %v2332, %v2335
        %vm2337 = vweird.f32 %v2260
        %vm2338 = vweird.f32 %v2332
        %vm2339 = vmor %vm2337, %vm2338
        %v2340 = vsel %vm2339, %v2332, %v2336
        %v2341 = vand.u32 2147483647, %v2260
        %vm2342 = vcmp.eq.f32.partialorder %v2341, 8.507059e+37
        %v2343 = vand.u32 %v2260, 2147483648
        %v2344 = vor.u32 1.1754944e-38, %v2343
        %v2345 = vsel %vm2342, %v2344, %v2340
        %v2346 = vmul.f32 1.0, %v2345
        %v2347 = vrcp.pop %v2261
        %v2348 = vmul.f32 %v2261, %v2347
        %v2349 = vsub.f32 1.0, %v2348
        %v2350 = vmul.f32 %v2347, %v2349
        %v2351 = vadd.f32 %v2347, %v2350
        %vm2352 = vweird.f32 %v2261
        %vm2353 = vweird.f32 %v2347
        %vm2354 = vmor %vm2352, %vm2353
        %v2355 = vsel %vm2354, %v2347, %v2351
        %v2356 = vand.u32 2147483647, %v2261
        %vm2357 = vcmp.eq.f32.partialorder %v2356, 8.507059e+37
        %v2358 = vand.u32 %v2261, 2147483648
        %v2359 = vor.u32 1.1754944e-38, %v2358
        %v2360 = vsel %vm2357, %v2359, %v2355
        %v2361 = vmul.f32 1.0, %v2360
        %v2362 = vrcp.pop %v2262
        %v2363 = vmul.f32 %v2262, %v2362
        %v2364 = vsub.f32 1.0, %v2363
        %v2365 = vmul.f32 %v2362, %v2364
        %v2366 = vadd.f32 %v2362, %v2365
        %vm2367 = vweird.f32 %v2262
        %vm2368 = vweird.f32 %v2362
        %vm2369 = vmor %vm2367, %vm2368
        %v2370 = vsel %vm2369, %v2362, %v2366
        %v2371 = vand.u32 2147483647, %v2262
        %vm2372 = vcmp.eq.f32.partialorder %v2371, 8.507059e+37
        %v2373 = vand.u32 %v2262, 2147483648
        %v2374 = vor.u32 1.1754944e-38, %v2373
        %v2375 = vsel %vm2372, %v2374, %v2370
        %v2376 = vmul.f32 1.0, %v2375
        %v2377 = vrcp.pop %v2263
        %v2378 = vmul.f32 %v2263, %v2377
        %v2379 = vsub.f32 1.0, %v2378
        %v2380 = vmul.f32 %v2377, %v2379
        %v2381 = vadd.f32 %v2377, %v2380
        %vm2382 = vweird.f32 %v2263
        %vm2383 = vweird.f32 %v2377
        %vm2384 = vmor %vm2382, %vm2383
        %v2385 = vsel %vm2384, %v2377, %v2381
        %v2386 = vand.u32 2147483647, %v2263
        %vm2387 = vcmp.eq.f32.partialorder %v2386, 8.507059e+37
        %v2388 = vand.u32 %v2263, 2147483648
        %v2389 = vor.u32 1.1754944e-38, %v2388
        %v2390 = vsel %vm2387, %v2389, %v2385
        %v2391 = vmul.f32 1.0, %v2390
        %v2392 = vrcp.pop %v2264
        %v2393 = vmul.f32 %v2264, %v2392
        %v2394 = vsub.f32 1.0, %v2393
        %v2395 = vmul.f32 %v2392, %v2394
        %v2396 = vadd.f32 %v2392, %v2395
        %vm2397 = vweird.f32 %v2264
        %vm2398 = vweird.f32 %v2392
        %vm2399 = vmor %vm2397, %vm2398
        %v2400 = vsel %vm2399, %v2392, %v2396
        %v2401 = vand.u32 2147483647, %v2264
        %vm2402 = vcmp.eq.f32.partialorder %v2401, 8.507059e+37
        %v2403 = vand.u32 %v2264, 2147483648
        %v2404 = vor.u32 1.1754944e-38, %v2403
        %v2405 = vsel %vm2402, %v2404, %v2400
        %v2406 = vmul.f32 1.0, %v2405
        %v2407 = vrcp.pop %v2265
        %v2408 = vmul.f32 %v2265, %v2407
        %v2409 = vsub.f32 1.0, %v2408
        %v2410 = vmul.f32 %v2407, %v2409
        %v2411 = vadd.f32 %v2407, %v2410
        %vm2412 = vweird.f32 %v2265
        %vm2413 = vweird.f32 %v2407
        %vm2414 = vmor %vm2412, %vm2413
        %v2415 = vsel %vm2414, %v2407, %v2411
        %v2416 = vand.u32 2147483647, %v2265
        %vm2417 = vcmp.eq.f32.partialorder %v2416, 8.507059e+37
        %v2418 = vand.u32 %v2265, 2147483648
        %v2419 = vor.u32 1.1754944e-38, %v2418
        %v2420 = vsel %vm2417, %v2419, %v2415
        %v2421 = vmul.f32 1.0, %v2420
        %v2422 = vrcp.pop %v2266
        %v2423 = vmul.f32 %v2266, %v2422
        %v2424 = vsub.f32 1.0, %v2423
        %v2425 = vmul.f32 %v2422, %v2424
        %v2426 = vadd.f32 %v2422, %v2425
        %vm2427 = vweird.f32 %v2266
        %vm2428 = vweird.f32 %v2422
        %vm2429 = vmor %vm2427, %vm2428
        %v2430 = vsel %vm2429, %v2422, %v2426
        %v2431 = vand.u32 2147483647, %v2266
        %vm2432 = vcmp.eq.f32.partialorder %v2431, 8.507059e+37
        %v2433 = vand.u32 %v2266, 2147483648
        %v2434 = vor.u32 1.1754944e-38, %v2433
        %v2435 = vsel %vm2432, %v2434, %v2430
        %v2436 = vmul.f32 1.0, %v2435
        %v2437 = vrcp.pop %v2267
        %v2438 = vmul.f32 %v2267, %v2437
        %v2439 = vsub.f32 1.0, %v2438
        %v2440 = vmul.f32 %v2437, %v2439
        %v2441 = vadd.f32 %v2437, %v2440
        %vm2442 = vweird.f32 %v2267
        %vm2443 = vweird.f32 %v2437
        %vm2444 = vmor %vm2442, %vm2443
        %v2445 = vsel %vm2444, %v2437, %v2441
        %v2446 = vand.u32 2147483647, %v2267
        %vm2447 = vcmp.eq.f32.partialorder %v2446, 8.507059e+37
        %v2448 = vand.u32 %v2267, 2147483648
        %v2449 = vor.u32 1.1754944e-38, %v2448
        %v2450 = vsel %vm2447, %v2449, %v2445
        %v2451 = vmul.f32 1.0, %v2450
        %v2452 = vrcp.pop %v2268
        %v2453 = vmul.f32 %v2268, %v2452
        %v2454 = vsub.f32 1.0, %v2453
        %v2455 = vmul.f32 %v2452, %v2454
        %v2456 = vadd.f32 %v2452, %v2455
        %vm2457 = vweird.f32 %v2268
        %vm2458 = vweird.f32 %v2452
        %vm2459 = vmor %vm2457, %vm2458
        %v2460 = vsel %vm2459, %v2452, %v2456
        %v2461 = vand.u32 2147483647, %v2268
        %vm2462 = vcmp.eq.f32.partialorder %v2461, 8.507059e+37
        %v2463 = vand.u32 %v2268, 2147483648
        %v2464 = vor.u32 1.1754944e-38, %v2463
        %v2465 = vsel %vm2462, %v2464, %v2460
        %v2466 = vmul.f32 1.0, %v2465
        %v2467 = vrcp.pop %v2269
        %v2468 = vmul.f32 %v2269, %v2467
        %v2469 = vsub.f32 1.0, %v2468
        %v2470 = vmul.f32 %v2467, %v2469
        %v2471 = vadd.f32 %v2467, %v2470
        %vm2472 = vweird.f32 %v2269
        %vm2473 = vweird.f32 %v2467
        %vm2474 = vmor %vm2472, %vm2473
        %v2475 = vsel %vm2474, %v2467, %v2471
        %v2476 = vand.u32 2147483647, %v2269
        %vm2477 = vcmp.eq.f32.partialorder %v2476, 8.507059e+37
        %v2478 = vand.u32 %v2269, 2147483648
        %v2479 = vor.u32 1.1754944e-38, %v2478
        %v2480 = vsel %vm2477, %v2479, %v2475
        %v2481 = vmul.f32 1.0, %v2480
        %v2482 = vrcp.pop %v2270
        %v2483 = vmul.f32 %v2270, %v2482
        %v2484 = vsub.f32 1.0, %v2483
        %v2485 = vmul.f32 %v2482, %v2484
        %v2486 = vadd.f32 %v2482, %v2485
        %vm2487 = vweird.f32 %v2270
        %vm2488 = vweird.f32 %v2482
        %vm2489 = vmor %vm2487, %vm2488
        %v2490 = vsel %vm2489, %v2482, %v2486
        %v2491 = vand.u32 2147483647, %v2270
        %vm2492 = vcmp.eq.f32.partialorder %v2491, 8.507059e+37
        %v2493 = vand.u32 %v2270, 2147483648
        %v2494 = vor.u32 1.1754944e-38, %v2493
        %v2495 = vsel %vm2492, %v2494, %v2490
        %v2496 = vmul.f32 1.0, %v2495
        %v2497 = vrcp.pop %v2271
        %v2498 = vmul.f32 %v2271, %v2497
        %v2499 = vsub.f32 1.0, %v2498
        %v2500 = vmul.f32 %v2497, %v2499
        %v2501 = vadd.f32 %v2497, %v2500
        %vm2502 = vweird.f32 %v2271
        %vm2503 = vweird.f32 %v2497
        %vm2504 = vmor %vm2502, %vm2503
        %v2505 = vsel %vm2504, %v2497, %v2501
        %v2506 = vand.u32 2147483647, %v2271
        %vm2507 = vcmp.eq.f32.partialorder %v2506, 8.507059e+37
        %v2508 = vand.u32 %v2271, 2147483648
        %v2509 = vor.u32 1.1754944e-38, %v2508
        %v2510 = vsel %vm2507, %v2509, %v2505
        %v2511 = vmul.f32 1.0, %v2510
        %v2512 = vtanh.pop %v2192
        %v2513 = vtanh.pop %v2193
        %v2514 = vtanh.pop %v2194
        %v2515 = vtanh.pop %v2195
        %v2516 = vtanh.pop %v2196
        %v2517 = vtanh.pop %v2197
        %v2518 = vtanh.pop %v2198
        %v2519 = vtanh.pop %v2199
        %v2520 = vtanh.pop %v2200
        %v2521 = vtanh.pop %v2201
        %v2522 = vtanh.pop %v2202
        %v2523 = vtanh.pop %v2203
        %v2524 = vtanh.pop %v2204
        %v2525 = vtanh.pop %v2205
        %v2526 = vtanh.pop %v2206
        %v2527 = vtanh.pop %v2207
        %v2528 = vmul.f32 %v2286, %v2512
        %v2529 = vmul.f32 %v2301, %v2513
        %v2530 = vmul.f32 %v2316, %v2514
        %v2531 = vmul.f32 %v2331, %v2515
        %v2532 = vmul.f32 %v2346, %v2516
        %v2533 = vmul.f32 %v2361, %v2517
        %v2534 = vmul.f32 %v2376, %v2518
        %v2535 = vmul.f32 %v2391, %v2519
        %v2536 = vmul.f32 %v2406, %v2520
        %v2537 = vmul.f32 %v2421, %v2521
        %v2538 = vmul.f32 %v2436, %v2522
        %v2539 = vmul.f32 %v2451, %v2523
        %v2540 = vmul.f32 %v2466, %v2524
        %v2541 = vmul.f32 %v2481, %v2525
        %v2542 = vmul.f32 %v2496, %v2526
        %v2543 = vmul.f32 %v2511, %v2527
        %v2544 = vpack.c.bf16 %v2530, %v2528
        %v2545 = vpack.c.bf16 %v2531, %v2529
        %v2546 = vpack.c.bf16 %v2534, %v2532
        %v2547 = vpack.c.bf16 %v2535, %v2533
        %v2548 = vpack.c.bf16 %v2538, %v2536
        %v2549 = vpack.c.bf16 %v2539, %v2537
        %v2550 = vpack.c.bf16 %v2542, %v2540
        %v2551 = vpack.c.bf16 %v2543, %v2541
        %v2552 = vld [vmem:[%s9] sm:$0xf]
        %v2553 = vld [vmem:[%s9 + $0x4] sm:$0xf]
        %v2554 = vld [vmem:[%s9 + $0x8] sm:$0xf]
        %v2555 = vld [vmem:[%s9 + $0xc] sm:$0xf]
        %v2556 = vld [vmem:[%s9 + $0x10] sm:$0xf]
        %v2557 = vld [vmem:[%s9 + $0x14] sm:$0xf]
        %v2558 = vld [vmem:[%s9 + $0x18] sm:$0xf]
        %v2559 = vld [vmem:[%s9 + $0x1c] sm:$0xf]
        %v2560 = vld [vmem:[%s10] sm:$0xff]
        %v2561 = vld [vmem:[%s10 + $0x8] sm:$0xff]
        %v2562 = vld [vmem:[%s10 + $0x10] sm:$0xff]
        %v2563 = vld [vmem:[%s10 + $0x18] sm:$0xff]
        %v2564 = vld [vmem:[%s10 + $0x20] sm:$0xff]
        %v2565 = vld [vmem:[%s10 + $0x28] sm:$0xff]
        %v2566 = vld [vmem:[%s10 + $0x30] sm:$0xff]
        %v2567 = vld [vmem:[%s10 + $0x38] sm:$0xff]
        %2569 = vset.pattern.permute.xlu0 0
        %2570 = vperm.xlu0 %2569, %v2560
        %v2571 = vpop.permute.xlu0 %2570
        %2574 = vset.pattern.permute.xlu0 0
        %2575 = vperm.xlu0 %2574, %v2561
        %v2576 = vpop.permute.xlu0 %2575
        %2579 = vset.pattern.permute.xlu0 0
        %2580 = vperm.xlu0 %2579, %v2562
        %v2581 = vpop.permute.xlu0 %2580
        %2584 = vset.pattern.permute.xlu0 0
        %2585 = vperm.xlu0 %2584, %v2563
        %v2586 = vpop.permute.xlu0 %2585
        %2589 = vset.pattern.permute.xlu0 0
        %2590 = vperm.xlu0 %2589, %v2564
        %v2591 = vpop.permute.xlu0 %2590
        %2594 = vset.pattern.permute.xlu0 0
        %2595 = vperm.xlu0 %2594, %v2565
        %v2596 = vpop.permute.xlu0 %2595
        %2599 = vset.pattern.permute.xlu0 0
        %2600 = vperm.xlu0 %2599, %v2566
        %v2601 = vpop.permute.xlu0 %2600
        %2604 = vset.pattern.permute.xlu0 0
        %2605 = vperm.xlu0 %2604, %v2567
        %v2606 = vpop.permute.xlu0 %2605
        %v2616 = vunpack.c.l.b16 %v2552
        %v2617 = vunpack.c.l.b16 %v2553
        %v2618 = vunpack.c.l.b16 %v2554
        %v2619 = vunpack.c.l.b16 %v2555
        %v2620 = vunpack.c.l.b16 %v2556
        %v2621 = vunpack.c.l.b16 %v2557
        %v2622 = vunpack.c.l.b16 %v2558
        %v2623 = vunpack.c.l.b16 %v2559
        %v2624 = vpack.c.b16 %v2617, %v2616
        %v2625 = vpack.c.b16 %v2619, %v2618
        %v2626 = vpack.c.b16 %v2621, %v2620
        %v2627 = vpack.c.b16 %v2623, %v2622
        %v2629 = vsel %vm1190, %v2624, 0
        %v2632 = vsel %vm1190, %v2625, 0
        %v2635 = vsel %vm1190, %v2626, 0
        %v2638 = vsel %vm1190, %v2627, 0
        %2640 = vmatpush.bf16.msra.mxu0 0
        %2641 = vmatpush.bf16.msra.mxu0 0
        %2642 = vmatpush.bf16.msra.mxu0 0
        %2643 = vmatpush.bf16.msra.mxu0 0
        %2644 = vmatpush.bf16.msra.mxu0 %v2550
        %2645 = vmatpush.bf16.msra.mxu0 %v2548
        %2646 = vmatpush.bf16.msra.mxu0 %v2546
        %2647 = vmatpush.bf16.msra.mxu0 %v2544
        %2648 = vmatmul.bf16.gmra.mxu0 %v2629
        %v2649 = vpop.f32.mrf.mxu0
        %v2650 = vadd.f32 %v2571, %v2649
        %v2651 = vpop.f32.mrf.mxu0
        %v2652 = vadd.f32 %v2576, %v2651
        %2653 = vmatmul.bf16.gmra.mxu0 %v2632
        %v2654 = vpop.f32.mrf.mxu0
        %v2655 = vadd.f32 %v2581, %v2654
        %v2656 = vpop.f32.mrf.mxu0
        %v2657 = vadd.f32 %v2586, %v2656
        %2658 = vmatmul.bf16.gmra.mxu0 %v2635
        %v2659 = vpop.f32.mrf.mxu0
        %v2660 = vadd.f32 %v2591, %v2659
        %v2661 = vpop.f32.mrf.mxu0
        %v2662 = vadd.f32 %v2596, %v2661
        %2663 = vmatmul.bf16.gmra.mxu0 %v2638
        %v2664 = vpop.f32.mrf.mxu0
        %v2665 = vadd.f32 %v2601, %v2664
        %v2666 = vpop.f32.mrf.mxu0
        %v2667 = vadd.f32 %v2606, %v2666
        %2668 = vdwg.mxu0
        %2669 = vmatpush.bf16.msra.mxu0 0
        %2670 = vmatpush.bf16.msra.mxu0 0
        %2671 = vmatpush.bf16.msra.mxu0 0
        %2672 = vmatpush.bf16.msra.mxu0 0
        %2673 = vmatpush.bf16.msra.mxu0 %v2551
        %2674 = vmatpush.bf16.msra.mxu0 %v2549
        %2675 = vmatpush.bf16.msra.mxu0 %v2547
        %2676 = vmatpush.bf16.msra.mxu0 %v2545
        %2677 = vmatmul.bf16.gmra.mxu0 %v2629
        %v2678 = vpop.f32.mrf.mxu0
        %v2679 = vadd.f32 %v2571, %v2678
        %v2680 = vpop.f32.mrf.mxu0
        %v2681 = vadd.f32 %v2576, %v2680
        %2682 = vmatmul.bf16.gmra.mxu0 %v2632
        %v2683 = vpop.f32.mrf.mxu0
        %v2684 = vadd.f32 %v2581, %v2683
        %v2685 = vpop.f32.mrf.mxu0
        %v2686 = vadd.f32 %v2586, %v2685
        %2687 = vmatmul.bf16.gmra.mxu0 %v2635
        %v2688 = vpop.f32.mrf.mxu0
        %v2689 = vadd.f32 %v2591, %v2688
        %v2690 = vpop.f32.mrf.mxu0
        %v2691 = vadd.f32 %v2596, %v2690
        %2692 = vmatmul.bf16.gmra.mxu0 %v2638
        %v2693 = vpop.f32.mrf.mxu0
        %v2694 = vadd.f32 %v2601, %v2693
        %v2695 = vpop.f32.mrf.mxu0
        %v2696 = vadd.f32 %v2606, %v2695
        %2697 = vdwg.mxu0
        %v2698 = vld [vmem:[%s11] sm:$0xf]
        %v2699 = vld [vmem:[%s11 + $0x4] sm:$0xf]
        %v2700 = vld [vmem:[%s11 + $0x8] sm:$0xf]
        %v2701 = vld [vmem:[%s11 + $0xc] sm:$0xf]
        %v2702 = vld [vmem:[%s11 + $0x10] sm:$0xf]
        %v2703 = vld [vmem:[%s11 + $0x14] sm:$0xf]
        %v2704 = vld [vmem:[%s11 + $0x18] sm:$0xf]
        %v2705 = vld [vmem:[%s11 + $0x1c] sm:$0xf]
        %v2706 = vld [vmem:[%s12] sm:$0xff]
        %v2707 = vld [vmem:[%s12 + $0x8] sm:$0xff]
        %v2708 = vld [vmem:[%s12 + $0x10] sm:$0xff]
        %v2709 = vld [vmem:[%s12 + $0x18] sm:$0xff]
        %v2710 = vld [vmem:[%s12 + $0x20] sm:$0xff]
        %v2711 = vld [vmem:[%s12 + $0x28] sm:$0xff]
        %v2712 = vld [vmem:[%s12 + $0x30] sm:$0xff]
        %v2713 = vld [vmem:[%s12 + $0x38] sm:$0xff]
        %2715 = vset.pattern.permute.xlu0 0
        %2716 = vperm.xlu0 %2715, %v2706
        %v2717 = vpop.permute.xlu0 %2716
        %2720 = vset.pattern.permute.xlu0 0
        %2721 = vperm.xlu0 %2720, %v2707
        %v2722 = vpop.permute.xlu0 %2721
        %2725 = vset.pattern.permute.xlu0 0
        %2726 = vperm.xlu0 %2725, %v2708
        %v2727 = vpop.permute.xlu0 %2726
        %2730 = vset.pattern.permute.xlu0 0
        %2731 = vperm.xlu0 %2730, %v2709
        %v2732 = vpop.permute.xlu0 %2731
        %2735 = vset.pattern.permute.xlu0 0
        %2736 = vperm.xlu0 %2735, %v2710
        %v2737 = vpop.permute.xlu0 %2736
        %2740 = vset.pattern.permute.xlu0 0
        %2741 = vperm.xlu0 %2740, %v2711
        %v2742 = vpop.permute.xlu0 %2741
        %2745 = vset.pattern.permute.xlu0 0
        %2746 = vperm.xlu0 %2745, %v2712
        %v2747 = vpop.permute.xlu0 %2746
        %2750 = vset.pattern.permute.xlu0 0
        %2751 = vperm.xlu0 %2750, %v2713
        %v2752 = vpop.permute.xlu0 %2751
        %v2762 = vunpack.c.l.b16 %v2698
        %v2763 = vunpack.c.l.b16 %v2699
        %v2764 = vunpack.c.l.b16 %v2700
        %v2765 = vunpack.c.l.b16 %v2701
        %v2766 = vunpack.c.l.b16 %v2702
        %v2767 = vunpack.c.l.b16 %v2703
        %v2768 = vunpack.c.l.b16 %v2704
        %v2769 = vunpack.c.l.b16 %v2705
        %v2770 = vpack.c.b16 %v2763, %v2762
        %v2771 = vpack.c.b16 %v2765, %v2764
        %v2772 = vpack.c.b16 %v2767, %v2766
        %v2773 = vpack.c.b16 %v2769, %v2768
        %v2775 = vsel %vm1190, %v2770, 0
        %v2778 = vsel %vm1190, %v2771, 0
        %v2781 = vsel %vm1190, %v2772, 0
        %v2784 = vsel %vm1190, %v2773, 0
        %2786 = vmatpush.bf16.msra.mxu0 0
        %2787 = vmatpush.bf16.msra.mxu0 0
        %2788 = vmatpush.bf16.msra.mxu0 0
        %2789 = vmatpush.bf16.msra.mxu0 0
        %2790 = vmatpush.bf16.msra.mxu0 %v2550
        %2791 = vmatpush.bf16.msra.mxu0 %v2548
        %2792 = vmatpush.bf16.msra.mxu0 %v2546
        %2793 = vmatpush.bf16.msra.mxu0 %v2544
        %2794 = vmatmul.bf16.gmra.mxu0 %v2775
        %v2795 = vpop.f32.mrf.mxu0
        %v2796 = vadd.f32 %v2717, %v2795
        %v2797 = vpop.f32.mrf.mxu0
        %v2798 = vadd.f32 %v2722, %v2797
        %2799 = vmatmul.bf16.gmra.mxu0 %v2778
        %v2800 = vpop.f32.mrf.mxu0
        %v2801 = vadd.f32 %v2727, %v2800
        %v2802 = vpop.f32.mrf.mxu0
        %v2803 = vadd.f32 %v2732, %v2802
        %2804 = vmatmul.bf16.gmra.mxu0 %v2781
        %v2805 = vpop.f32.mrf.mxu0
        %v2806 = vadd.f32 %v2737, %v2805
        %v2807 = vpop.f32.mrf.mxu0
        %v2808 = vadd.f32 %v2742, %v2807
        %2809 = vmatmul.bf16.gmra.mxu0 %v2784
        %v2810 = vpop.f32.mrf.mxu0
        %v2811 = vadd.f32 %v2747, %v2810
        %v2812 = vpop.f32.mrf.mxu0
        %v2813 = vadd.f32 %v2752, %v2812
        %2814 = vdwg.mxu0
        %2815 = vmatpush.bf16.msra.mxu0 0
        %2816 = vmatpush.bf16.msra.mxu0 0
        %2817 = vmatpush.bf16.msra.mxu0 0
        %2818 = vmatpush.bf16.msra.mxu0 0
        %2819 = vmatpush.bf16.msra.mxu0 %v2551
        %2820 = vmatpush.bf16.msra.mxu0 %v2549
        %2821 = vmatpush.bf16.msra.mxu0 %v2547
        %2822 = vmatpush.bf16.msra.mxu0 %v2545
        %2823 = vmatmul.bf16.gmra.mxu0 %v2775
        %v2824 = vpop.f32.mrf.mxu0
        %v2825 = vadd.f32 %v2717, %v2824
        %v2826 = vpop.f32.mrf.mxu0
        %v2827 = vadd.f32 %v2722, %v2826
        %2828 = vmatmul.bf16.gmra.mxu0 %v2778
        %v2829 = vpop.f32.mrf.mxu0
        %v2830 = vadd.f32 %v2727, %v2829
        %v2831 = vpop.f32.mrf.mxu0
        %v2832 = vadd.f32 %v2732, %v2831
        %2833 = vmatmul.bf16.gmra.mxu0 %v2781
        %v2834 = vpop.f32.mrf.mxu0
        %v2835 = vadd.f32 %v2737, %v2834
        %v2836 = vpop.f32.mrf.mxu0
        %v2837 = vadd.f32 %v2742, %v2836
        %2838 = vmatmul.bf16.gmra.mxu0 %v2784
        %v2839 = vpop.f32.mrf.mxu0
        %v2840 = vadd.f32 %v2747, %v2839
        %v2841 = vpop.f32.mrf.mxu0
        %v2842 = vadd.f32 %v2752, %v2841
        %2843 = vdwg.mxu0
        %v2844 = vadd.f32 %v834, %v2650
        %v2845 = vadd.f32 %v835, %v2679
        %v2846 = vadd.f32 %v836, %v2652
        %v2847 = vadd.f32 %v837, %v2681
        %v2848 = vadd.f32 %v838, %v2655
        %v2849 = vadd.f32 %v839, %v2684
        %v2850 = vadd.f32 %v840, %v2657
        %v2851 = vadd.f32 %v841, %v2686
        %v2852 = vadd.f32 %v842, %v2660
        %v2853 = vadd.f32 %v843, %v2689
        %v2854 = vadd.f32 %v844, %v2662
        %v2855 = vadd.f32 %v845, %v2691
        %v2856 = vadd.f32 %v846, %v2665
        %v2857 = vadd.f32 %v847, %v2694
        %v2858 = vadd.f32 %v848, %v2667
        %v2859 = vadd.f32 %v849, %v2696
        %v2860 = vmul.f32 %v2844, 0.70710677
        %v2861 = vmul.f32 %v2845, 0.70710677
        %v2862 = vmul.f32 %v2846, 0.70710677
        %v2863 = vmul.f32 %v2847, 0.70710677
        %v2864 = vmul.f32 %v2848, 0.70710677
        %v2865 = vmul.f32 %v2849, 0.70710677
        %v2866 = vmul.f32 %v2850, 0.70710677
        %v2867 = vmul.f32 %v2851, 0.70710677
        %v2868 = vmul.f32 %v2852, 0.70710677
        %v2869 = vmul.f32 %v2853, 0.70710677
        %v2870 = vmul.f32 %v2854, 0.70710677
        %v2871 = vmul.f32 %v2855, 0.70710677
        %v2872 = vmul.f32 %v2856, 0.70710677
        %v2873 = vmul.f32 %v2857, 0.70710677
        %v2874 = vmul.f32 %v2858, 0.70710677
        %v2875 = vmul.f32 %v2859, 0.70710677
        %2876 = vst [vmem:[%s494] sm:$0xff] %v2860
        %2877 = vst [vmem:[%s494 + $0x8] sm:$0xff] %v2861
        %2878 = vst [vmem:[%s494 + $0x10] sm:$0xff] %v2862
        %2879 = vst [vmem:[%s494 + $0x18] sm:$0xff] %v2863
        %2880 = vst [vmem:[%s494 + $0x20] sm:$0xff] %v2864
        %2881 = vst [vmem:[%s494 + $0x28] sm:$0xff] %v2865
        %2882 = vst [vmem:[%s494 + $0x30] sm:$0xff] %v2866
        %2883 = vst [vmem:[%s494 + $0x38] sm:$0xff] %v2867
        %2884 = vst [vmem:[%s494 + $0x40] sm:$0xff] %v2868
        %2885 = vst [vmem:[%s494 + $0x48] sm:$0xff] %v2869
        %2886 = vst [vmem:[%s494 + $0x50] sm:$0xff] %v2870
        %2887 = vst [vmem:[%s494 + $0x58] sm:$0xff] %v2871
        %2888 = vst [vmem:[%s494 + $0x60] sm:$0xff] %v2872
        %2889 = vst [vmem:[%s494 + $0x68] sm:$0xff] %v2873
        %2890 = vst [vmem:[%s494 + $0x70] sm:$0xff] %v2874
        %2891 = vst [vmem:[%s494 + $0x78] sm:$0xff] %v2875
        %2892 = vst [vmem:[%s501] sm:$0xff] %v2796
        %2893 = vst [vmem:[%s501 + $0x8] sm:$0xff] %v2825
        %2894 = vst [vmem:[%s501 + $0x10] sm:$0xff] %v2798
        %2895 = vst [vmem:[%s501 + $0x18] sm:$0xff] %v2827
        %2896 = vst [vmem:[%s501 + $0x20] sm:$0xff] %v2801
        %2897 = vst [vmem:[%s501 + $0x28] sm:$0xff] %v2830
        %2898 = vst [vmem:[%s501 + $0x30] sm:$0xff] %v2803
        %2899 = vst [vmem:[%s501 + $0x38] sm:$0xff] %v2832
        %2900 = vst [vmem:[%s501 + $0x40] sm:$0xff] %v2806
        %2901 = vst [vmem:[%s501 + $0x48] sm:$0xff] %v2835
        %2902 = vst [vmem:[%s501 + $0x50] sm:$0xff] %v2808
        %2903 = vst [vmem:[%s501 + $0x58] sm:$0xff] %v2837
        %2904 = vst [vmem:[%s501 + $0x60] sm:$0xff] %v2811
        %2905 = vst [vmem:[%s501 + $0x68] sm:$0xff] %v2840
        %2906 = vst [vmem:[%s501 + $0x70] sm:$0xff] %v2813
        %2907 = vst [vmem:[%s501 + $0x78] sm:$0xff] %v2842
        %s2908 = sand.u32 %s328, 1
        %s2909 = scalar_lea.sflag [#allocation4], %s2908
        %s2910 = sand.u32 %s328, 1
        %s2911 = smul.addr %s2910, 128
        %s2912 = scalar_lea.vmem [#allocation3], %s2911
        %s2913 = sand.u32 %s354, 1
        %s2914 = scalar_lea.sflag [#allocation6], %s2913
        %s2915 = sand.u32 %s354, 1
        %s2916 = smul.addr %s2915, 128
        %s2917 = scalar_lea.vmem [#allocation5], %s2916
        // Predicated region
        $region73: #{residual_block.1} parent=71 // pred_check
          %p2918 = pneg %p338
        $region74: #{residual_block.1} parent=71 // pred_check_branch
          %2920 = sbr.rel (%p2918) target = $region76
        $region75: #{residual_block.1} parent=71 // pred_region
          %2922 = vsyncadd %s2909, 0
          %s2923 = smul.addr %s32, 16
          %s2924 = smul.addr %s2923, 8
          %s2925 = scalar_lea.hbm %s13, %s2924
          %s2926 = sshll.u32 %s2912, 4
          %s2927 = int_to_ptr.vmem [resolvable:$true] %s2926
          %s2928 = sshll.u32 %s2925, 4
          %s2929 = int_to_ptr.hbm [resolvable:$true] %s2928
          %2934 = dma.vmem_to_hbm [thread:$0]  %s2927, 2048, %s2929, %s2909, 256, 256, 16
        $region76: #{residual_block.1} parent=71 // pred_fallthru
          _
        // Predicated region
        $region77: #{residual_block.1} parent=71 // pred_check
          %p2935 = pneg %p364
        $region78: #{residual_block.1} parent=71 // pred_check_branch
          %2937 = sbr.rel (%p2935) target = $region80
        $region79: #{residual_block.1} parent=71 // pred_region
          %2939 = vsyncadd %s2914, 0
          %s2940 = smul.addr %s32, 16
          %s2941 = smul.addr %s2940, 8
          %s2942 = scalar_lea.hbm %s14, %s2941
          %s2943 = sshll.u32 %s2917, 4
          %s2944 = int_to_ptr.vmem [resolvable:$true] %s2943
          %s2945 = sshll.u32 %s2942, 4
          %s2946 = int_to_ptr.hbm [resolvable:$true] %s2945
          %2951 = dma.vmem_to_hbm [thread:$0]  %s2944, 2048, %s2946, %s2914, 256, 256, 16
        $region80: #{residual_block.1} parent=71 // pred_fallthru
          _
      $region72: #{residual_block.1} parent=5 // pred_fallthru
        _
      %p2952 = scmp.le.s32.totalorder 2, %s27
      // Predicated region
      $region81: #{residual_block.1} parent=5 // pred_check
        %p2953 = pneg %p2952
      $region82: #{residual_block.1} parent=5 // pred_check_branch
        %2955 = sbr.rel (%p2953) target = $region84
      $region83: #{residual_block.1} parent=5 // pred_region
        %s2956 = ssub.s32 %s27, 2
        // Predicated region
        $region85: #{residual_block.1} parent=83 // pred_check
          %p2957 = pneg %p344
        $region86: #{residual_block.1} parent=83 // pred_check_branch
          %2959 = sbr.rel (%p2957) target = $region88
        $region87: #{residual_block.1} parent=83 // pred_region
          %s2960 = sand.u32 %s329, 1
          %s2961 = scalar_lea.sflag [#allocation4], %s2960
          %s2962 = sand.u32 %s329, 1
          %s2963 = smul.addr %s2962, 128
          %s2964 = scalar_lea.vmem [#allocation3], %s2963
          %2966 = dma.done %s2961, 2048
        $region88: #{residual_block.1} parent=83 // pred_fallthru
          _
        // Predicated region
        $region89: #{residual_block.1} parent=83 // pred_check
          %p2967 = pneg %p370
        $region90: #{residual_block.1} parent=83 // pred_check_branch
          %2969 = sbr.rel (%p2967) target = $region92
        $region91: #{residual_block.1} parent=83 // pred_region
          %s2970 = sand.u32 %s355, 1
          %s2971 = scalar_lea.sflag [#allocation6], %s2970
          %s2972 = sand.u32 %s355, 1
          %s2973 = smul.addr %s2972, 128
          %s2974 = scalar_lea.vmem [#allocation5], %s2973
          %2976 = dma.done %s2971, 2048
        $region92: #{residual_block.1} parent=83 // pred_fallthru
          _
      $region84: #{residual_block.1} parent=5 // pred_fallthru
        _
    $region6: #{residual_block.1} parent=1 // loop_footer
      %s31 = sadd.s32 1, %s27
    $region7: #{residual_block.1} parent=1 // loop_footer_branch
      %26 = sbr.rel target = $region3
    $region8: #{residual_block.1} parent=1 // loop_exit
      _
    %2977 = vsyncpa [#allocation4], 1
    %s2978 = scalar_lea.sflag [#allocation4], 1
    %2979 = vsyncpa %s2978, 1
    %2980 = vsyncpa [#allocation6], 1
    %s2981 = scalar_lea.sflag [#allocation6], 1
    %2982 = vsyncpa %s2981, 1

</llo_original>
